<compile_context>
chip_gen: v5e
topology: v5e:2x2
jax: 0.10.0
libtpu: 0.0.40
codegen_flags: <defaults>
</compile_context>

<pallas_src>
import functools
import math

import jax
import jax.numpy as jnp
from jax import lax
from jax.experimental import pallas as pl
from jax.experimental.pallas import tpu as pltpu

_EPS = 1e-5
_LANES = 128
_TM_MAX = 1024     # rows per grid step (amortize ~0.35us/step; safe for v7x VMEM)
_ROW_CHUNK = 256   # rows per in-kernel matmul chunk (bounds f32 vreg liveness)


def _round_up(x, m):
    return ((x + m - 1) // m) * m


def _pick_tile(m):
    """Rows-per-tile (multiple of 16 for bf16 sublanes) and padded M.

    Aims for >= 2 grid steps whenever M allows it (keeps both v7x TensorCores
    busy) while capping the per-step footprint.
    """
    if m >= 2 * _TM_MAX:
        tm = _TM_MAX
    else:
        tm = min(_TM_MAX, _round_up(max((m + 1) // 2, 8), 16))
    return tm, _round_up(m, tm)


def _row_chunk(tm):
    if tm > _ROW_CHUNK and tm % _ROW_CHUNK == 0:
        return _ROW_CHUNK
    return tm


# --------------------------- Pallas kernels ---------------------------

def _conv_stats_kernel(x_ref, w_ref, *out_refs, chunk, store_y):
    """Pass 1: conv-as-matmul (+ optional bf16 y store) + per-tile BN partials.

    x_ref : [TM, K]     bf16 im2col patches for this M tile
    w_ref : [K, Npad]   bf16 weight matrix (same block every grid step)
    y_ref : [TM, Npad]  bf16 pre-BN activation (only when store_y)
    stats : [8, Npad]   f32; row 0 = sum(y), row 1 = sum(y*y); rows 2-7 unused.
    """
    if store_y:
        y_ref, stats_ref = out_refs
    else:
        (stats_ref,) = out_refs
    w = w_ref[...]
    n_pad = w.shape[1]
    n_chunks = x_ref.shape[0] // chunk

    def body(c, carry):
        s, ss = carry
        r0 = pl.multiple_of(c * chunk, chunk)
        y = jnp.dot(x_ref[pl.ds(r0, chunk), :], w,
                    preferred_element_type=jnp.float32)
        if store_y:
            y_ref[pl.ds(r0, chunk), :] = y.astype(y_ref.dtype)
        return (s + jnp.sum(y, axis=0, keepdims=True),
                ss + jnp.sum(y * y, axis=0, keepdims=True))

    zero = jnp.zeros((1, n_pad), jnp.float32)
    s, ss = lax.fori_loop(0, n_chunks, body, (zero, zero), unroll=True)
    stats_ref[0:1, :] = s
    stats_ref[1:2, :] = ss


def _bn_act_kernel(y_ref, scale_ref, shift_ref, o_ref, *, apply_relu):
    """Pass 2 (wide layers): folded BatchNorm on stored bf16 y (+ ReLU)."""
    y = y_ref[...].astype(jnp.float32) * scale_ref[...] + shift_ref[...]
    if apply_relu:
        y = jnp.maximum(y, 0.0)
    o_ref[...] = y.astype(o_ref.dtype)


def _conv_bn_act_kernel(x_ref, w_ref, scale_ref, shift_ref, o_ref, *,
                        apply_relu, chunk):
    """Pass 2 (small-K layer): recompute conv + folded BatchNorm (+ ReLU)."""
    w = w_ref[...]
    scale = scale_ref[...]
    shift = shift_ref[...]
    n_chunks = x_ref.shape[0] // chunk

    def body(c, carry):
        r0 = pl.multiple_of(c * chunk, chunk)
        y = jnp.dot(x_ref[pl.ds(r0, chunk), :], w,
                    preferred_element_type=jnp.float32)
        y = y * scale + shift
        if apply_relu:
            y = jnp.maximum(y, 0.0)
        o_ref[pl.ds(r0, chunk), :] = y.astype(o_ref.dtype)
        return carry

    lax.fori_loop(0, n_chunks, body, 0, unroll=True)


# --------------------------- layer wrapper ---------------------------

def conv_bn_act_pallas(x_nhwc, w, gamma, beta, *, apply_relu, out_dtype,
                       eps=_EPS):
    """Conv2d(k=3, s=2, p=1; bias folded away) + BN(batch stats) + optional ReLU.

    x_nhwc: [B, H, W, Cin]; w: [Cout, Cin, 3, 3] (PyTorch layout).
    Returns [B, OH, OW, Cout] in `out_dtype`.
    """
    B, H, W, Cin = x_nhwc.shape
    Cout = w.shape[0]
    OH = (H - 1) // 2 + 1
    OW = (W - 1) // 2 + 1
    K = 9 * Cin
    M = B * OH * OW

    # glue: pad + im2col via strided slices (order kh, kw, cin), bf16 operands.
    # TODO(synk): replace with in-kernel halo DMA of the raw padded input.
    xp = jnp.pad(x_nhwc.astype(jnp.bfloat16), ((0, 0), (1, 1), (1, 1), (0, 0)))
    cols = []
    for kh in range(3):
        for kw in range(3):
            cols.append(xp[:, kh:kh + 2 * OH:2, kw:kw + 2 * OW:2, :])
    patches = jnp.concatenate(cols, axis=-1).reshape(M, K)

    tm, m_pad = _pick_tile(M)
    n_tiles = m_pad // tm
    chunk = _row_chunk(tm)
    # Tight channel padding: full 128-lane multiples only for wide layers;
    # small Cout (latent_dim) pads to 8 lanes so we don't move zero bytes.
    n_pad = _round_up(Cout, _LANES) if Cout >= _LANES else _round_up(Cout, 8)

    if m_pad != M:
        # Zero rows give y == 0 -> contribute nothing to sum / sumsq.
        patches = jnp.pad(patches, ((0, m_pad - M), (0, 0)))

    # Weight matrix [(kh, kw, cin), cout], zero-padded channels.
    w_mat = jnp.transpose(w, (2, 3, 1, 0)).reshape(K, Cout).astype(jnp.bfloat16)
    if n_pad != Cout:
        w_mat = jnp.pad(w_mat, ((0, 0), (0, n_pad - Cout)))

    # When the patches are cheaper to re-read than the pre-BN activation
    # (layer 1: K=9), skip storing y entirely and recompute in pass 2.
    fuse = K < n_pad
    cparams = pltpu.CompilerParams(dimension_semantics=("parallel",))

    # ---- pass 1: matmul + per-tile partial statistics ----
    if fuse:
        stats = pl.pallas_call(
            functools.partial(_conv_stats_kernel, chunk=chunk, store_y=False),
            out_shape=jax.ShapeDtypeStruct((8 * n_tiles, n_pad), jnp.float32),
            grid_spec=pltpu.PrefetchScalarGridSpec(
                num_scalar_prefetch=0,
                grid=(n_tiles,),
                in_specs=[pl.BlockSpec((tm, K), lambda i: (i, 0)),
                          pl.BlockSpec((K, n_pad), lambda i: (0, 0))],
                out_specs=pl.BlockSpec((8, n_pad), lambda i: (i, 0))),
            compiler_params=cparams,
        )(patches, w_mat)
        y = None
    else:
        y, stats = pl.pallas_call(
            functools.partial(_conv_stats_kernel, chunk=chunk, store_y=True),
            out_shape=(jax.ShapeDtypeStruct((m_pad, n_pad), jnp.bfloat16),
                       jax.ShapeDtypeStruct((8 * n_tiles, n_pad), jnp.float32)),
            grid_spec=pltpu.PrefetchScalarGridSpec(
                num_scalar_prefetch=0,
                grid=(n_tiles,),
                in_specs=[pl.BlockSpec((tm, K), lambda i: (i, 0)),
                          pl.BlockSpec((K, n_pad), lambda i: (0, 0))],
                out_specs=[pl.BlockSpec((tm, n_pad), lambda i: (i, 0)),
                           pl.BlockSpec((8, n_pad), lambda i: (i, 0))]),
            compiler_params=cparams,
        )(patches, w_mat)

    # ---- tiny glue: finalize batch stats, fold BN into scale/shift rows ----
    part = stats.reshape(n_tiles, 8, n_pad)
    mean = jnp.sum(part[:, 0, :], axis=0) / M
    var = jnp.maximum(jnp.sum(part[:, 1, :], axis=0) / M - mean * mean, 0.0)
    gamma_p = jnp.pad(gamma.astype(jnp.float32), (0, n_pad - Cout))
    beta_p = jnp.pad(beta.astype(jnp.float32), (0, n_pad - Cout))
    scale = (gamma_p * lax.rsqrt(var + eps)).reshape(1, n_pad)
    shift = (beta_p - mean.reshape(-1) * scale.reshape(-1)).reshape(1, n_pad)

    # ---- pass 2: normalize (+ ReLU) ----
    if fuse:
        out = pl.pallas_call(
            functools.partial(_conv_bn_act_kernel,
                              apply_relu=apply_relu, chunk=chunk),
            out_shape=jax.ShapeDtypeStruct((m_pad, n_pad), out_dtype),
            grid_spec=pltpu.PrefetchScalarGridSpec(
                num_scalar_prefetch=0,
                grid=(n_tiles,),
                in_specs=[pl.BlockSpec((tm, K), lambda i: (i, 0)),
                          pl.BlockSpec((K, n_pad), lambda i: (0, 0)),
                          pl.BlockSpec((1, n_pad), lambda i: (0, 0)),
                          pl.BlockSpec((1, n_pad), lambda i: (0, 0))],
                out_specs=pl.BlockSpec((tm, n_pad), lambda i: (i, 0))),
            compiler_params=cparams,
        )(patches, w_mat, scale, shift)
    else:
        out = pl.pallas_call(
            functools.partial(_bn_act_kernel, apply_relu=apply_relu),
            out_shape=jax.ShapeDtypeStruct((m_pad, n_pad), out_dtype),
            grid_spec=pltpu.PrefetchScalarGridSpec(
                num_scalar_prefetch=0,
                grid=(n_tiles,),
                in_specs=[pl.BlockSpec((tm, n_pad), lambda i: (i, 0)),
                          pl.BlockSpec((1, n_pad), lambda i: (0, 0)),
                          pl.BlockSpec((1, n_pad), lambda i: (0, 0))],
                out_specs=pl.BlockSpec((tm, n_pad), lambda i: (i, 0))),
            compiler_params=cparams,
        )(y, scale, shift)

    out = out[:M].reshape(B, OH, OW, n_pad)
    if n_pad != Cout:
        out = out[..., :Cout]
    return out


def spectrogram_encoder(x_nchw, params):
    """Forward pass. x_nchw: [B, 1, H, W] -> [B, latent_dim, H//8, W//8]."""
    x = jnp.transpose(x_nchw, (0, 2, 3, 1))  # NCHW -> NHWC
    # Conv biases are omitted on purpose: they cancel under training-mode BN.
    h = conv_bn_act_pallas(x, params["w1"], params["g1"], params["bt1"],
                           apply_relu=True, out_dtype=jnp.bfloat16)
    h = conv_bn_act_pallas(h, params["w2"], params["g2"], params["bt2"],
                           apply_relu=True, out_dtype=jnp.bfloat16)
    h = conv_bn_act_pallas(h, params["w3"], params["g3"], params["bt3"],
                           apply_relu=False, out_dtype=jnp.float32)
    return jnp.transpose(h, (0, 3, 1, 2))  # NHWC -> NCHW


# ---------------- pure-JAX f32 reference (sanity check) ----------------
def _conv_bn_relu_ref(x, w, b, gamma, beta, apply_relu, eps=_EPS):
    y = lax.conv_general_dilated(
        x, jnp.transpose(w, (2, 3, 1, 0)),
        window_strides=(2, 2), padding=((1, 1), (1, 1)),
        dimension_numbers=("NHWC", "HWIO", "NHWC"),
        precision=lax.Precision.HIGHEST)
    y = y + b
    mean = jnp.mean(y, axis=(0, 1, 2), keepdims=True)
    var = jnp.mean(jnp.square(y - mean), axis=(0, 1, 2), keepdims=True)
    y = (y - mean) * lax.rsqrt(var + eps) * gamma + beta
    if apply_relu:
        y = jnp.maximum(y, 0.0)
    return y


def _encoder_ref(x_nchw, params):
    x = jnp.transpose(x_nchw, (0, 2, 3, 1))
    h = _conv_bn_relu_ref(x, params["w1"], params["b1"], params["g1"], params["bt1"], True)
    h = _conv_bn_relu_ref(h, params["w2"], params["b2"], params["g2"], params["bt2"], True)
    h = _conv_bn_relu_ref(h, params["w3"], params["b3"], params["g3"], params["bt3"], False)
    return jnp.transpose(h, (0, 3, 1, 2))


# ---------------- deterministic parameter init ----------------
def init_params(key, latent_dim=4):
    def conv_init(k, cout, cin):
        fan_in = cin * 9
        bound = 1.0 / math.sqrt(fan_in)
        kw, kb = jax.random.split(k)
        w = jax.random.uniform(kw, (cout, cin, 3, 3), jnp.float32, -bound, bound)
        b = jax.random.uniform(kb, (cout,), jnp.float32, -bound, bound)
        return w, b

    k1, k2, k3 = jax.random.split(key, 3)
    w1, b1 = conv_init(k1, 64, 1)
    w2, b2 = conv_init(k2, 128, 64)
    w3, b3 = conv_init(k3, latent_dim, 128)
    return {
        "w1": w1, "b1": b1, "g1": jnp.ones((64,)), "bt1": jnp.zeros((64,)),
        "w2": w2, "b2": b2, "g2": jnp.ones((128,)), "bt2": jnp.zeros((128,)),
        "w3": w3, "b3": b3, "g3": jnp.ones((latent_dim,)), "bt3": jnp.zeros((latent_dim,)),
    }


if __name__ == "__main__":
    key = jax.random.PRNGKey(0)
    kx, kp = jax.random.split(key)

    B, C, H, W = 2, 1, 16, 16          # small spectrogram, NCHW like PyTorch
    latent_dim = 4
    x = jax.random.normal(kx, (B, C, H, W), jnp.float32)
    params = init_params(kp, latent_dim=latent_dim)

    encoder = jax.jit(spectrogram_encoder)
    out = jax.block_until_ready(encoder(x, params))

    assert out.shape == (B, latent_dim, H // 8, W // 8), out.shape
    assert out.dtype == jnp.float32, out.dtype

    ref = jax.block_until_ready(_encoder_ref(x, params))
    diff = jnp.abs(out - ref)
    max_diff = float(jnp.max(diff))
    mean_diff = float(jnp.mean(diff))
    # bf16 matmul operands and a bf16 pre-BN intermediate (f32 accumulation /
    # f32 BN stats): allow a few % of the O(1) BN-normalized output range.
    assert max_diff < 8e-2, f"max diff vs f32 reference: {max_diff}"
    assert mean_diff < 1.5e-2, f"mean diff vs f32 reference: {mean_diff}"

    print("KERNEL_OK")
</pallas_src>

<mosaic_0001>
module attributes {stable_mosaic.version = 11 : i64} {
  func.func @_conv_stats_kernel(%arg0: i32, %arg1: memref<64x9xbf16, #tpu.memory_space<vmem>>, %arg2: memref<9x64xbf16, #tpu.memory_space<vmem>>, %arg3: memref<8x64xf32, #tpu.memory_space<vmem>>) attributes {dimension_semantics = [#tpu.dimension_semantics<parallel>], iteration_bounds = array<i64: 2>, scalar_prefetch = 0 : i64, scratch_operands = 0 : i64, tpu.core_type = #tpu.core_type<tc>, window_params = [{transform_indices = @transform_0, window_bounds = array<i64: 64, 9>}, {pipeline_mode = #tpu.pipeline_mode<synchronous>, transform_indices = @transform_1, window_bounds = array<i64: 9, 64>}, {transform_indices = @transform_2, window_bounds = array<i64: 8, 64>}]} {
    %c0 = arith.constant 0 : index
    %c0_0 = arith.constant 0 : index
    %0 = vector.load %arg2[%c0, %c0_0] : memref<9x64xbf16, #tpu.memory_space<vmem>>, vector<9x64xbf16>
    %cst = arith.constant 0.000000e+00 : f32
    %1 = vector.broadcast %cst : f32 to vector<1x64xf32>
    %c0_i32 = arith.constant 0 : i32
    %c64_i32 = arith.constant 64 : i32
    %2 = arith.muli %c0_i32, %c64_i32 : i32
    %3 = tpu.assume_multiple %2, 64 : i32
    %4 = arith.index_cast %3 : i32 to index
    %c0_1 = arith.constant 0 : index
    %5 = vector.load %arg1[%4, %c0_1] : memref<64x9xbf16, #tpu.memory_space<vmem>>, vector<64x9xbf16>
    %cst_2 = arith.constant dense<0.000000e+00> : vector<64x64xf32>
    %6 = tpu.matmul %5, %0, %cst_2 {dimension_numbers = #tpu.dot_dimension_numbers<[1], [0], [0], [1], [0, 0, 1, 1], [], []>} : vector<64x9xbf16>, vector<9x64xbf16>, vector<64x64xf32> -> vector<64x64xf32>
    %cst_3 = arith.constant dense<0.000000e+00> : vector<64xf32>
    %7 = vector.multi_reduction <add>, %6, %cst_3 [0] : vector<64x64xf32> to vector<64xf32>
    %8 = vector.shape_cast %7 : vector<64xf32> to vector<1x64xf32>
    %9 = arith.addf %1, %8 : vector<1x64xf32>
    %10 = arith.mulf %6, %6 : vector<64x64xf32>
    %cst_4 = arith.constant dense<0.000000e+00> : vector<64xf32>
    %11 = vector.multi_reduction <add>, %10, %cst_4 [0] : vector<64x64xf32> to vector<64xf32>
    %12 = vector.shape_cast %11 : vector<64xf32> to vector<1x64xf32>
    %13 = arith.addf %1, %12 : vector<1x64xf32>
    %c1_i32 = arith.constant 1 : i32
    %c0_5 = arith.constant 0 : index
    %c0_6 = arith.constant 0 : index
    %14 = vector.load %arg3[%c0_5, %c0_6] : memref<8x64xf32, #tpu.memory_space<vmem>>, vector<1x64xf32>
    tpu.vector_store %arg3[%c0_5, %c0_6], %9 {strides = array<i32>} : memref<8x64xf32, #tpu.memory_space<vmem>>, vector<1x64xf32>,
    %c1 = arith.constant 1 : index
    %c0_7 = arith.constant 0 : index
    %15 = vector.load %arg3[%c1, %c0_7] : memref<8x64xf32, #tpu.memory_space<vmem>>, vector<1x64xf32>
    tpu.vector_store %arg3[%c1, %c0_7], %13 {strides = array<i32>} : memref<8x64xf32, #tpu.memory_space<vmem>>, vector<1x64xf32>,
    return
  }
  func.func @transform_0(%arg0: i32) -> (i32, i32) {
    %c0_i32 = arith.constant 0 : i32
    %c0_i32_0 = arith.constant 0 : i32
    return %arg0, %c0_i32 : i32, i32
  }
  func.func @transform_1(%arg0: i32) -> (i32, i32) {
    %c0_i32 = arith.constant 0 : i32
    %c0_i32_0 = arith.constant 0 : i32
    %c0_i32_1 = arith.constant 0 : i32
    return %c0_i32, %c0_i32_0 : i32, i32
  }
  func.func @transform_2(%arg0: i32) -> (i32, i32) {
    %c0_i32 = arith.constant 0 : i32
    %c0_i32_0 = arith.constant 0 : i32
    return %arg0, %c0_i32 : i32, i32
  }
}

module attributes {stable_mosaic.version = 11 : i64} {
  func.func @_conv_bn_act_kernel(%arg0: i32, %arg1: memref<64x9xbf16, #tpu.memory_space<vmem>>, %arg2: memref<9x64xbf16, #tpu.memory_space<vmem>>, %arg3: memref<1x64xf32, #tpu.memory_space<vmem>>, %arg4: memref<1x64xf32, #tpu.memory_space<vmem>>, %arg5: memref<64x64xbf16, #tpu.memory_space<vmem>>) attributes {dimension_semantics = [#tpu.dimension_semantics<parallel>], iteration_bounds = array<i64: 2>, scalar_prefetch = 0 : i64, scratch_operands = 0 : i64, tpu.core_type = #tpu.core_type<tc>, window_params = [{transform_indices = @transform_0, window_bounds = array<i64: 64, 9>}, {pipeline_mode = #tpu.pipeline_mode<synchronous>, transform_indices = @transform_1, window_bounds = array<i64: 9, 64>}, {pipeline_mode = #tpu.pipeline_mode<synchronous>, transform_indices = @transform_2, window_bounds = array<i64: 1, 64>}, {pipeline_mode = #tpu.pipeline_mode<synchronous>, transform_indices = @transform_3, window_bounds = array<i64: 1, 64>}, {transform_indices = @transform_4, window_bounds = array<i64: 64, 64>}]} {
    %c0 = arith.constant 0 : index
    %c0_0 = arith.constant 0 : index
    %0 = vector.load %arg2[%c0, %c0_0] : memref<9x64xbf16, #tpu.memory_space<vmem>>, vector<9x64xbf16>
    %c0_1 = arith.constant 0 : index
    %c0_2 = arith.constant 0 : index
    %1 = vector.load %arg3[%c0_1, %c0_2] : memref<1x64xf32, #tpu.memory_space<vmem>>, vector<1x64xf32>
    %c0_3 = arith.constant 0 : index
    %c0_4 = arith.constant 0 : index
    %2 = vector.load %arg4[%c0_3, %c0_4] : memref<1x64xf32, #tpu.memory_space<vmem>>, vector<1x64xf32>
    %c0_i32 = arith.constant 0 : i32
    %c64_i32 = arith.constant 64 : i32
    %3 = arith.muli %c0_i32, %c64_i32 : i32
    %4 = tpu.assume_multiple %3, 64 : i32
    %5 = arith.index_cast %4 : i32 to index
    %c0_5 = arith.constant 0 : index
    %6 = vector.load %arg1[%5, %c0_5] : memref<64x9xbf16, #tpu.memory_space<vmem>>, vector<64x9xbf16>
    %cst = arith.constant dense<0.000000e+00> : vector<64x64xf32>
    %7 = tpu.matmul %6, %0, %cst {dimension_numbers = #tpu.dot_dimension_numbers<[1], [0], [0], [1], [0, 0, 1, 1], [], []>} : vector<64x9xbf16>, vector<9x64xbf16>, vector<64x64xf32> -> vector<64x64xf32>
    %8 = vector.broadcast %1 : vector<1x64xf32> to vector<64x64xf32>
    %9 = arith.mulf %7, %8 : vector<64x64xf32>
    %10 = vector.broadcast %2 : vector<1x64xf32> to vector<64x64xf32>
    %11 = arith.addf %9, %10 : vector<64x64xf32>
    %cst_6 = arith.constant 0.000000e+00 : f32
    %12 = vector.broadcast %cst_6 : f32 to vector<64x64xf32>
    %13 = arith.maximumf %11, %12 : vector<64x64xf32>
    %14 = arith.truncf %13 : vector<64x64xf32> to vector<64x64xbf16>
    %15 = arith.index_cast %4 : i32 to index
    %c0_7 = arith.constant 0 : index
    %16 = vector.load %arg5[%15, %c0_7] : memref<64x64xbf16, #tpu.memory_space<vmem>>, vector<64x64xbf16>
    tpu.vector_store %arg5[%15, %c0_7], %14 {strides = array<i32>} : memref<64x64xbf16, #tpu.memory_space<vmem>>, vector<64x64xbf16>,
    %c1_i32 = arith.constant 1 : i32
    return
  }
  func.func @transform_0(%arg0: i32) -> (i32, i32) {
    %c0_i32 = arith.constant 0 : i32
    %c0_i32_0 = arith.constant 0 : i32
    return %arg0, %c0_i32 : i32, i32
  }
  func.func @transform_1(%arg0: i32) -> (i32, i32) {
    %c0_i32 = arith.constant 0 : i32
    %c0_i32_0 = arith.constant 0 : i32
    %c0_i32_1 = arith.constant 0 : i32
    return %c0_i32, %c0_i32_0 : i32, i32
  }
  func.func @transform_2(%arg0: i32) -> (i32, i32) {
    %c0_i32 = arith.constant 0 : i32
    %c0_i32_0 = arith.constant 0 : i32
    %c0_i32_1 = arith.constant 0 : i32
    return %c0_i32, %c0_i32_0 : i32, i32
  }
  func.func @transform_3(%arg0: i32) -> (i32, i32) {
    %c0_i32 = arith.constant 0 : i32
    %c0_i32_0 = arith.constant 0 : i32
    %c0_i32_1 = arith.constant 0 : i32
    return %c0_i32, %c0_i32_0 : i32, i32
  }
  func.func @transform_4(%arg0: i32) -> (i32, i32) {
    %c0_i32 = arith.constant 0 : i32
    %c0_i32_0 = arith.constant 0 : i32
    return %arg0, %c0_i32 : i32, i32
  }
}

module attributes {stable_mosaic.version = 11 : i64} {
  func.func @_conv_stats_kernel(%arg0: i32, %arg1: memref<16x576xbf16, #tpu.memory_space<vmem>>, %arg2: memref<576x128xbf16, #tpu.memory_space<vmem>>, %arg3: memref<16x128xbf16, #tpu.memory_space<vmem>>, %arg4: memref<8x128xf32, #tpu.memory_space<vmem>>) attributes {dimension_semantics = [#tpu.dimension_semantics<parallel>], iteration_bounds = array<i64: 2>, scalar_prefetch = 0 : i64, scratch_operands = 0 : i64, tpu.core_type = #tpu.core_type<tc>, window_params = [{transform_indices = @transform_0, window_bounds = array<i64: 16, 576>}, {pipeline_mode = #tpu.pipeline_mode<synchronous>, transform_indices = @transform_1, window_bounds = array<i64: 576, 128>}, {transform_indices = @transform_2, window_bounds = array<i64: 16, 128>}, {transform_indices = @transform_3, window_bounds = array<i64: 8, 128>}]} {
    %c0 = arith.constant 0 : index
    %c0_0 = arith.constant 0 : index
    %0 = vector.load %arg2[%c0, %c0_0] : memref<576x128xbf16, #tpu.memory_space<vmem>>, vector<576x128xbf16>
    %cst = arith.constant 0.000000e+00 : f32
    %1 = vector.broadcast %cst : f32 to vector<1x128xf32>
    %c0_i32 = arith.constant 0 : i32
    %c16_i32 = arith.constant 16 : i32
    %2 = arith.muli %c0_i32, %c16_i32 : i32
    %3 = tpu.assume_multiple %2, 16 : i32
    %4 = arith.index_cast %3 : i32 to index
    %c0_1 = arith.constant 0 : index
    %5 = vector.load %arg1[%4, %c0_1] : memref<16x576xbf16, #tpu.memory_space<vmem>>, vector<16x576xbf16>
    %cst_2 = arith.constant dense<0.000000e+00> : vector<16x128xf32>
    %6 = tpu.matmul %5, %0, %cst_2 {dimension_numbers = #tpu.dot_dimension_numbers<[1], [0], [0], [1], [0, 0, 1, 1], [], []>} : vector<16x576xbf16>, vector<576x128xbf16>, vector<16x128xf32> -> vector<16x128xf32>
    %7 = arith.truncf %6 : vector<16x128xf32> to vector<16x128xbf16>
    %8 = arith.index_cast %3 : i32 to index
    %c0_3 = arith.constant 0 : index
    %9 = vector.load %arg3[%8, %c0_3] : memref<16x128xbf16, #tpu.memory_space<vmem>>, vector<16x128xbf16>
    tpu.vector_store %arg3[%8, %c0_3], %7 {strides = array<i32>} : memref<16x128xbf16, #tpu.memory_space<vmem>>, vector<16x128xbf16>,
    %cst_4 = arith.constant dense<0.000000e+00> : vector<128xf32>
    %10 = vector.multi_reduction <add>, %6, %cst_4 [0] : vector<16x128xf32> to vector<128xf32>
    %11 = vector.shape_cast %10 : vector<128xf32> to vector<1x128xf32>
    %12 = arith.addf %1, %11 : vector<1x128xf32>
    %13 = arith.mulf %6, %6 : vector<16x128xf32>
    %cst_5 = arith.constant dense<0.000000e+00> : vector<128xf32>
    %14 = vector.multi_reduction <add>, %13, %cst_5 [0] : vector<16x128xf32> to vector<128xf32>
    %15 = vector.shape_cast %14 : vector<128xf32> to vector<1x128xf32>
    %16 = arith.addf %1, %15 : vector<1x128xf32>
    %c1_i32 = arith.constant 1 : i32
    %c0_6 = arith.constant 0 : index
    %c0_7 = arith.constant 0 : index
    %17 = vector.load %arg4[%c0_6, %c0_7] : memref<8x128xf32, #tpu.memory_space<vmem>>, vector<1x128xf32>
    tpu.vector_store %arg4[%c0_6, %c0_7], %12 {strides = array<i32>} : memref<8x128xf32, #tpu.memory_space<vmem>>, vector<1x128xf32>,
    %c1 = arith.constant 1 : index
    %c0_8 = arith.constant 0 : index
    %18 = vector.load %arg4[%c1, %c0_8] : memref<8x128xf32, #tpu.memory_space<vmem>>, vector<1x128xf32>
    tpu.vector_store %arg4[%c1, %c0_8], %16 {strides = array<i32>} : memref<8x128xf32, #tpu.memory_space<vmem>>, vector<1x128xf32>,
    return
  }
  func.func @transform_0(%arg0: i32) -> (i32, i32) {
    %c0_i32 = arith.constant 0 : i32
    %c0_i32_0 = arith.constant 0 : i32
    return %arg0, %c0_i32 : i32, i32
  }
  func.func @transform_1(%arg0: i32) -> (i32, i32) {
    %c0_i32 = arith.constant 0 : i32
    %c0_i32_0 = arith.constant 0 : i32
    %c0_i32_1 = arith.constant 0 : i32
    return %c0_i32, %c0_i32_0 : i32, i32
  }
  func.func @transform_2(%arg0: i32) -> (i32, i32) {
    %c0_i32 = arith.constant 0 : i32
    %c0_i32_0 = arith.constant 0 : i32
    return %arg0, %c0_i32 : i32, i32
  }
  func.func @transform_3(%arg0: i32) -> (i32, i32) {
    %c0_i32 = arith.constant 0 : i32
    %c0_i32_0 = arith.constant 0 : i32
    return %arg0, %c0_i32 : i32, i32
  }
}

module attributes {stable_mosaic.version = 11 : i64} {
  func.func @_bn_act_kernel(%arg0: i32, %arg1: memref<16x128xbf16, #tpu.memory_space<vmem>>, %arg2: memref<1x128xf32, #tpu.memory_space<vmem>>, %arg3: memref<1x128xf32, #tpu.memory_space<vmem>>, %arg4: memref<16x128xbf16, #tpu.memory_space<vmem>>) attributes {dimension_semantics = [#tpu.dimension_semantics<parallel>], iteration_bounds = array<i64: 2>, scalar_prefetch = 0 : i64, scratch_operands = 0 : i64, tpu.core_type = #tpu.core_type<tc>, window_params = [{transform_indices = @transform_0, window_bounds = array<i64: 16, 128>}, {pipeline_mode = #tpu.pipeline_mode<synchronous>, transform_indices = @transform_1, window_bounds = array<i64: 1, 128>}, {pipeline_mode = #tpu.pipeline_mode<synchronous>, transform_indices = @transform_2, window_bounds = array<i64: 1, 128>}, {transform_indices = @transform_3, window_bounds = array<i64: 16, 128>}]} {
    %c0 = arith.constant 0 : index
    %c0_0 = arith.constant 0 : index
    %0 = vector.load %arg1[%c0, %c0_0] : memref<16x128xbf16, #tpu.memory_space<vmem>>, vector<16x128xbf16>
    %1 = arith.extf %0 : vector<16x128xbf16> to vector<16x128xf32>
    %c0_1 = arith.constant 0 : index
    %c0_2 = arith.constant 0 : index
    %2 = vector.load %arg2[%c0_1, %c0_2] : memref<1x128xf32, #tpu.memory_space<vmem>>, vector<1x128xf32>
    %3 = vector.broadcast %2 : vector<1x128xf32> to vector<16x128xf32>
    %4 = arith.mulf %1, %3 : vector<16x128xf32>
    %c0_3 = arith.constant 0 : index
    %c0_4 = arith.constant 0 : index
    %5 = vector.load %arg3[%c0_3, %c0_4] : memref<1x128xf32, #tpu.memory_space<vmem>>, vector<1x128xf32>
    %6 = vector.broadcast %5 : vector<1x128xf32> to vector<16x128xf32>
    %7 = arith.addf %4, %6 : vector<16x128xf32>
    %cst = arith.constant 0.000000e+00 : f32
    %8 = vector.broadcast %cst : f32 to vector<16x128xf32>
    %9 = arith.maximumf %7, %8 : vector<16x128xf32>
    %10 = arith.truncf %9 : vector<16x128xf32> to vector<16x128xbf16>
    %c0_5 = arith.constant 0 : index
    %c0_6 = arith.constant 0 : index
    %11 = vector.load %arg4[%c0_5, %c0_6] : memref<16x128xbf16, #tpu.memory_space<vmem>>, vector<16x128xbf16>
    tpu.vector_store %arg4[%c0_5, %c0_6], %10 {strides = array<i32>} : memref<16x128xbf16, #tpu.memory_space<vmem>>, vector<16x128xbf16>,
    return
  }
  func.func @transform_0(%arg0: i32) -> (i32, i32) {
    %c0_i32 = arith.constant 0 : i32
    %c0_i32_0 = arith.constant 0 : i32
    return %arg0, %c0_i32 : i32, i32
  }
  func.func @transform_1(%arg0: i32) -> (i32, i32) {
    %c0_i32 = arith.constant 0 : i32
    %c0_i32_0 = arith.constant 0 : i32
    %c0_i32_1 = arith.constant 0 : i32
    return %c0_i32, %c0_i32_0 : i32, i32
  }
  func.func @transform_2(%arg0: i32) -> (i32, i32) {
    %c0_i32 = arith.constant 0 : i32
    %c0_i32_0 = arith.constant 0 : i32
    %c0_i32_1 = arith.constant 0 : i32
    return %c0_i32, %c0_i32_0 : i32, i32
  }
  func.func @transform_3(%arg0: i32) -> (i32, i32) {
    %c0_i32 = arith.constant 0 : i32
    %c0_i32_0 = arith.constant 0 : i32
    return %arg0, %c0_i32 : i32, i32
  }
}

module attributes {stable_mosaic.version = 11 : i64} {
  func.func @_conv_stats_kernel(%arg0: i32, %arg1: memref<16x1152xbf16, #tpu.memory_space<vmem>>, %arg2: memref<1152x8xbf16, #tpu.memory_space<vmem>>, %arg3: memref<16x8xbf16, #tpu.memory_space<vmem>>, %arg4: memref<8x8xf32, #tpu.memory_space<vmem>>) attributes {dimension_semantics = [#tpu.dimension_semantics<parallel>], iteration_bounds = array<i64: 1>, scalar_prefetch = 0 : i64, scratch_operands = 0 : i64, tpu.core_type = #tpu.core_type<tc>, window_params = [{transform_indices = @transform_0, window_bounds = array<i64: 16, 1152>}, {pipeline_mode = #tpu.pipeline_mode<synchronous>, transform_indices = @transform_1, window_bounds = array<i64: 1152, 8>}, {transform_indices = @transform_2, window_bounds = array<i64: 16, 8>}, {transform_indices = @transform_3, window_bounds = array<i64: 8, 8>}]} {
    %c0 = arith.constant 0 : index
    %c0_0 = arith.constant 0 : index
    %0 = vector.load %arg2[%c0, %c0_0] : memref<1152x8xbf16, #tpu.memory_space<vmem>>, vector<1152x8xbf16>
    %cst = arith.constant 0.000000e+00 : f32
    %1 = vector.broadcast %cst : f32 to vector<1x8xf32>
    %c0_i32 = arith.constant 0 : i32
    %c16_i32 = arith.constant 16 : i32
    %2 = arith.muli %c0_i32, %c16_i32 : i32
    %3 = tpu.assume_multiple %2, 16 : i32
    %4 = arith.index_cast %3 : i32 to index
    %c0_1 = arith.constant 0 : index
    %5 = vector.load %arg1[%4, %c0_1] : memref<16x1152xbf16, #tpu.memory_space<vmem>>, vector<16x1152xbf16>
    %cst_2 = arith.constant dense<0.000000e+00> : vector<16x8xf32>
    %6 = tpu.matmul %5, %0, %cst_2 {dimension_numbers = #tpu.dot_dimension_numbers<[1], [0], [0], [1], [0, 0, 1, 1], [], []>} : vector<16x1152xbf16>, vector<1152x8xbf16>, vector<16x8xf32> -> vector<16x8xf32>
    %7 = arith.truncf %6 : vector<16x8xf32> to vector<16x8xbf16>
    %8 = arith.index_cast %3 : i32 to index
    %c0_3 = arith.constant 0 : index
    %9 = vector.load %arg3[%8, %c0_3] : memref<16x8xbf16, #tpu.memory_space<vmem>>, vector<16x8xbf16>
    tpu.vector_store %arg3[%8, %c0_3], %7 {strides = array<i32>} : memref<16x8xbf16, #tpu.memory_space<vmem>>, vector<16x8xbf16>,
    %cst_4 = arith.constant dense<0.000000e+00> : vector<8xf32>
    %10 = vector.multi_reduction <add>, %6, %cst_4 [0] : vector<16x8xf32> to vector<8xf32>
    %11 = vector.shape_cast %10 : vector<8xf32> to vector<1x8xf32>
    %12 = arith.addf %1, %11 : vector<1x8xf32>
    %13 = arith.mulf %6, %6 : vector<16x8xf32>
    %cst_5 = arith.constant dense<0.000000e+00> : vector<8xf32>
    %14 = vector.multi_reduction <add>, %13, %cst_5 [0] : vector<16x8xf32> to vector<8xf32>
    %15 = vector.shape_cast %14 : vector<8xf32> to vector<1x8xf32>
    %16 = arith.addf %1, %15 : vector<1x8xf32>
    %c1_i32 = arith.constant 1 : i32
    %c0_6 = arith.constant 0 : index
    %c0_7 = arith.constant 0 : index
    %17 = vector.load %arg4[%c0_6, %c0_7] : memref<8x8xf32, #tpu.memory_space<vmem>>, vector<1x8xf32>
    tpu.vector_store %arg4[%c0_6, %c0_7], %12 {strides = array<i32>} : memref<8x8xf32, #tpu.memory_space<vmem>>, vector<1x8xf32>,
    %c1 = arith.constant 1 : index
    %c0_8 = arith.constant 0 : index
    %18 = vector.load %arg4[%c1, %c0_8] : memref<8x8xf32, #tpu.memory_space<vmem>>, vector<1x8xf32>
    tpu.vector_store %arg4[%c1, %c0_8], %16 {strides = array<i32>} : memref<8x8xf32, #tpu.memory_space<vmem>>, vector<1x8xf32>,
    return
  }
  func.func @transform_0(%arg0: i32) -> (i32, i32) {
    %c0_i32 = arith.constant 0 : i32
    %c0_i32_0 = arith.constant 0 : i32
    return %arg0, %c0_i32 : i32, i32
  }
  func.func @transform_1(%arg0: i32) -> (i32, i32) {
    %c0_i32 = arith.constant 0 : i32
    %c0_i32_0 = arith.constant 0 : i32
    %c0_i32_1 = arith.constant 0 : i32
    return %c0_i32, %c0_i32_0 : i32, i32
  }
  func.func @transform_2(%arg0: i32) -> (i32, i32) {
    %c0_i32 = arith.constant 0 : i32
    %c0_i32_0 = arith.constant 0 : i32
    return %arg0, %c0_i32 : i32, i32
  }
  func.func @transform_3(%arg0: i32) -> (i32, i32) {
    %c0_i32 = arith.constant 0 : i32
    %c0_i32_0 = arith.constant 0 : i32
    return %arg0, %c0_i32 : i32, i32
  }
}

module attributes {stable_mosaic.version = 11 : i64} {
  func.func @_bn_act_kernel(%arg0: i32, %arg1: memref<16x8xbf16, #tpu.memory_space<vmem>>, %arg2: memref<1x8xf32, #tpu.memory_space<vmem>>, %arg3: memref<1x8xf32, #tpu.memory_space<vmem>>, %arg4: memref<16x8xf32, #tpu.memory_space<vmem>>) attributes {dimension_semantics = [#tpu.dimension_semantics<parallel>], iteration_bounds = array<i64: 1>, scalar_prefetch = 0 : i64, scratch_operands = 0 : i64, tpu.core_type = #tpu.core_type<tc>, window_params = [{transform_indices = @transform_0, window_bounds = array<i64: 16, 8>}, {pipeline_mode = #tpu.pipeline_mode<synchronous>, transform_indices = @transform_1, window_bounds = array<i64: 1, 8>}, {pipeline_mode = #tpu.pipeline_mode<synchronous>, transform_indices = @transform_2, window_bounds = array<i64: 1, 8>}, {transform_indices = @transform_3, window_bounds = array<i64: 16, 8>}]} {
    %c0 = arith.constant 0 : index
    %c0_0 = arith.constant 0 : index
    %0 = vector.load %arg1[%c0, %c0_0] : memref<16x8xbf16, #tpu.memory_space<vmem>>, vector<16x8xbf16>
    %1 = arith.extf %0 : vector<16x8xbf16> to vector<16x8xf32>
    %c0_1 = arith.constant 0 : index
    %c0_2 = arith.constant 0 : index
    %2 = vector.load %arg2[%c0_1, %c0_2] : memref<1x8xf32, #tpu.memory_space<vmem>>, vector<1x8xf32>
    %3 = vector.broadcast %2 : vector<1x8xf32> to vector<16x8xf32>
    %4 = arith.mulf %1, %3 : vector<16x8xf32>
    %c0_3 = arith.constant 0 : index
    %c0_4 = arith.constant 0 : index
    %5 = vector.load %arg3[%c0_3, %c0_4] : memref<1x8xf32, #tpu.memory_space<vmem>>, vector<1x8xf32>
    %6 = vector.broadcast %5 : vector<1x8xf32> to vector<16x8xf32>
    %7 = arith.addf %4, %6 : vector<16x8xf32>
    %c0_5 = arith.constant 0 : index
    %c0_6 = arith.constant 0 : index
    %8 = vector.load %arg4[%c0_5, %c0_6] : memref<16x8xf32, #tpu.memory_space<vmem>>, vector<16x8xf32>
    tpu.vector_store %arg4[%c0_5, %c0_6], %7 {strides = array<i32>} : memref<16x8xf32, #tpu.memory_space<vmem>>, vector<16x8xf32>,
    return
  }
  func.func @transform_0(%arg0: i32) -> (i32, i32) {
    %c0_i32 = arith.constant 0 : i32
    %c0_i32_0 = arith.constant 0 : i32
    return %arg0, %c0_i32 : i32, i32
  }
  func.func @transform_1(%arg0: i32) -> (i32, i32) {
    %c0_i32 = arith.constant 0 : i32
    %c0_i32_0 = arith.constant 0 : i32
    %c0_i32_1 = arith.constant 0 : i32
    return %c0_i32, %c0_i32_0 : i32, i32
  }
  func.func @transform_2(%arg0: i32) -> (i32, i32) {
    %c0_i32 = arith.constant 0 : i32
    %c0_i32_0 = arith.constant 0 : i32
    %c0_i32_1 = arith.constant 0 : i32
    return %c0_i32, %c0_i32_0 : i32, i32
  }
  func.func @transform_3(%arg0: i32) -> (i32, i32) {
    %c0_i32 = arith.constant 0 : i32
    %c0_i32_0 = arith.constant 0 : i32
    return %arg0, %c0_i32 : i32, i32
  }
}

</mosaic_0001>

<llo_original>
// kernel: spectrogram_encoder.7
$region0: #{spectrogram_encoder.7}
  #allocation0 [shape = 'u32[]', space=smem, size = 0x4, offset = 0x4, fixed_abs, tag = 'smem constant byte address 0x4 - core index']
  #allocation1 [shape = 'u32[72,128]{1,0:T(1,128)}', space=vmem, size = 0x9000, scoped, tag = 'internal scratch']
  %s0 = inlined_call_operand.vmem [shape: bf16[128,9], index: 0, kind: input, shape index: {}]
  %s1 = inlined_call_operand.vmem [shape: bf16[9,64], index: 1, kind: input, shape index: {}]
  %s2 = inlined_call_operand.vmem [shape: f32[1,64], index: 2, kind: input, shape index: {}]
  %s3 = inlined_call_operand.vmem [shape: f32[1,64], index: 3, kind: input, shape index: {}]
  %s4 = inlined_call_operand.vmem [shape: bf16[128,64], index: 4, kind: output, shape index: {}]
  %s5 = sld [smem:[#allocation0]]
  $region49: #{spectrogram_encoder.7} parent=0
    _
  %s7 = ssub.s32 1, %s5
  %s8 = scalar_select 0, %s7, %s5
  loop: start=0, step=1, limit=4
  $region2: #{spectrogram_encoder.7} parent=0 // loop_pre_header
    _
  $region3: #{spectrogram_encoder.7} parent=0 // loop_header
    %s10 = sphi 0, %s14
    %p11 = scmp.ge.s32.totalorder %s10, 4
    %s20 = sphi 0, %s22
    %s23 = sphi 0, %s20
    %s24 = sphi 0, %s23
    %s40 = sphi 0, %s24
    %s44 = sphi 0, %s44
    %s46 = sphi 0, %s44
    %s47 = sphi 0, %s46
    %s61 = sphi 0, %s47
    %s65 = sphi 0, %s65
    %s67 = sphi 0, %s65
    %s68 = sphi 0, %s67
    %s82 = sphi 0, %s68
    %s86 = sphi 0, %s86
    %s88 = sphi 0, %s86
    %s89 = sphi 0, %s88
    %s103 = sphi 0, %s89
    %s109 = sphi 0, %s111
    %s112 = sphi 0, %s109
    %s113 = sphi 0, %s112
    %s129 = sphi 0, %s113
  $region4: #{spectrogram_encoder.7} parent=0 // loop_header_branch
    %13 = sbr.rel (%p11) target = $region8
  $region5: #{spectrogram_encoder.7} parent=0 // loop_body
    %s15 = ssub.s32 %s10, 1
    %s16 = ssub.s32 %s10, 2
    %s17 = sadd.s32 %s10, 1
    %s18 = ssub.s32 %s10, %s17
    %p19 = scmp.eq.s32.totalorder %s18, 0
    %s21 = sadd.s32 %s20, 1
    %s22 = scalar_select %p19, %s20, %s21
    %p25 = pneg %p19
    %p26 = scmp.eq.s32.totalorder %s10, 1
    %p27 = por %p25, %p26
    %p28 = scmp.ne.s32.totalorder %s20, %s23
    %p29 = scmp.eq.s32.totalorder %s10, 0
    %p30 = por %p28, %p29
    %p31 = scmp.ne.s32.totalorder %s20, %s23
    %p32 = scmp.eq.s32.totalorder %s15, 1
    %p33 = por %p31, %p32
    %p34 = scmp.ne.s32.totalorder %s23, %s24
    %p35 = scmp.eq.s32.totalorder %s15, 0
    %p36 = por %p34, %p35
    %p37 = scmp.ne.s32.totalorder %s23, %s24
    %p38 = scmp.eq.s32.totalorder %s16, 1
    %p39 = por %p37, %p38
    %p41 = scmp.ne.s32.totalorder %s24, %s40
    %p42 = scmp.eq.s32.totalorder %s16, 0
    %p43 = por %p41, %p42
    %s45 = sadd.s32 %s44, 1
    %p48 = scmp.eq.s32.totalorder %s10, 1
    %p49 = scmp.ne.s32.totalorder %s44, %s46
    %p50 = scmp.eq.s32.totalorder %s10, 0
    %p51 = por %p49, %p50
    %p52 = scmp.ne.s32.totalorder %s44, %s46
    %p53 = scmp.eq.s32.totalorder %s15, 1
    %p54 = por %p52, %p53
    %p55 = scmp.ne.s32.totalorder %s46, %s47
    %p56 = scmp.eq.s32.totalorder %s15, 0
    %p57 = por %p55, %p56
    %p58 = scmp.ne.s32.totalorder %s46, %s47
    %p59 = scmp.eq.s32.totalorder %s16, 1
    %p60 = por %p58, %p59
    %p62 = scmp.ne.s32.totalorder %s47, %s61
    %p63 = scmp.eq.s32.totalorder %s16, 0
    %p64 = por %p62, %p63
    %s66 = sadd.s32 %s65, 1
    %p69 = scmp.eq.s32.totalorder %s10, 1
    %p70 = scmp.ne.s32.totalorder %s65, %s67
    %p71 = scmp.eq.s32.totalorder %s10, 0
    %p72 = por %p70, %p71
    %p73 = scmp.ne.s32.totalorder %s65, %s67
    %p74 = scmp.eq.s32.totalorder %s15, 1
    %p75 = por %p73, %p74
    %p76 = scmp.ne.s32.totalorder %s67, %s68
    %p77 = scmp.eq.s32.totalorder %s15, 0
    %p78 = por %p76, %p77
    %p79 = scmp.ne.s32.totalorder %s67, %s68
    %p80 = scmp.eq.s32.totalorder %s16, 1
    %p81 = por %p79, %p80
    %p83 = scmp.ne.s32.totalorder %s68, %s82
    %p84 = scmp.eq.s32.totalorder %s16, 0
    %p85 = por %p83, %p84
    %s87 = sadd.s32 %s86, 1
    %p90 = scmp.eq.s32.totalorder %s10, 1
    %p91 = scmp.ne.s32.totalorder %s86, %s88
    %p92 = scmp.eq.s32.totalorder %s10, 0
    %p93 = por %p91, %p92
    %p94 = scmp.ne.s32.totalorder %s86, %s88
    %p95 = scmp.eq.s32.totalorder %s15, 1
    %p96 = por %p94, %p95
    %p97 = scmp.ne.s32.totalorder %s88, %s89
    %p98 = scmp.eq.s32.totalorder %s15, 0
    %p99 = por %p97, %p98
    %p100 = scmp.ne.s32.totalorder %s88, %s89
    %p101 = scmp.eq.s32.totalorder %s16, 1
    %p102 = por %p100, %p101
    %p104 = scmp.ne.s32.totalorder %s89, %s103
    %p105 = scmp.eq.s32.totalorder %s16, 0
    %p106 = por %p104, %p105
    %s107 = ssub.s32 %s10, %s17
    %p108 = scmp.eq.s32.totalorder %s107, 0
    %s110 = sadd.s32 %s109, 1
    %s111 = scalar_select %p108, %s109, %s110
    %p114 = pneg %p108
    %p115 = scmp.eq.s32.totalorder %s10, 1
    %p116 = por %p114, %p115
    %p117 = scmp.ne.s32.totalorder %s109, %s112
    %p118 = scmp.eq.s32.totalorder %s10, 0
    %p119 = por %p117, %p118
    %p120 = scmp.ne.s32.totalorder %s109, %s112
    %p121 = scmp.eq.s32.totalorder %s15, 1
    %p122 = por %p120, %p121
    %p123 = scmp.ne.s32.totalorder %s112, %s113
    %p124 = scmp.eq.s32.totalorder %s15, 0
    %p125 = por %p123, %p124
    %p126 = scmp.ne.s32.totalorder %s112, %s113
    %p127 = scmp.eq.s32.totalorder %s16, 1
    %p128 = por %p126, %p127
    %p130 = scmp.ne.s32.totalorder %s113, %s129
    %p131 = scmp.eq.s32.totalorder %s16, 0
    %p132 = por %p130, %p131
    %p133 = scmp.le.s32.totalorder 1, %s10
    %p134 = scmp.lt.s32.totalorder %s10, 3
    %p135 = pnand %p133, %p134
    %p136 = pneg %p135
    // Predicated region
    $region9: #{spectrogram_encoder.7} parent=5 // pred_check
      _
    $region10: #{spectrogram_encoder.7} parent=5 // pred_check_branch
      %138 = sbr.rel (%p135) target = $region12
    $region11: #{spectrogram_encoder.7} parent=5 // pred_region
      %s139 = ssub.s32 %s10, 1
      // Predicated region
      $region13: #{spectrogram_encoder.7} parent=11 // pred_check
        %p140 = pneg %p57
      $region14: #{spectrogram_encoder.7} parent=11 // pred_check_branch
        %142 = sbr.rel (%p140) target = $region16
      $region15: #{spectrogram_encoder.7} parent=11 // pred_region
        _
      $region16: #{spectrogram_encoder.7} parent=11 // pred_fallthru
        _
      // Predicated region
      $region17: #{spectrogram_encoder.7} parent=11 // pred_check
        %p143 = pneg %p78
      $region18: #{spectrogram_encoder.7} parent=11 // pred_check_branch
        %145 = sbr.rel (%p143) target = $region20
      $region19: #{spectrogram_encoder.7} parent=11 // pred_region
        _
      $region20: #{spectrogram_encoder.7} parent=11 // pred_fallthru
        _
      // Predicated region
      $region21: #{spectrogram_encoder.7} parent=11 // pred_check
        %p146 = pneg %p99
      $region22: #{spectrogram_encoder.7} parent=11 // pred_check_branch
        %148 = sbr.rel (%p146) target = $region24
      $region23: #{spectrogram_encoder.7} parent=11 // pred_region
        _
      $region24: #{spectrogram_encoder.7} parent=11 // pred_fallthru
        _
    $region12: #{spectrogram_encoder.7} parent=5 // pred_fallthru
      _
    %p149 = scmp.lt.s32.totalorder %s10, 2
    // Predicated region
    $region25: #{spectrogram_encoder.7} parent=5 // pred_check
      %p150 = pneg %p149
    $region26: #{spectrogram_encoder.7} parent=5 // pred_check_branch
      %152 = sbr.rel (%p150) target = $region28
    $region27: #{spectrogram_encoder.7} parent=5 // pred_region
      // Predicated region
      $region29: #{spectrogram_encoder.7} parent=27 // pred_check
        %p153 = pneg %p30
      $region30: #{spectrogram_encoder.7} parent=27 // pred_check_branch
        %155 = sbr.rel (%p153) target = $region32
      $region31: #{spectrogram_encoder.7} parent=27 // pred_region
        %s156 = smul.u32 8, %s10
        %p157 = scmp.lt.s32.totalorder %s156, 15
        %s158 = scalar_select %p157, %s156, 15
        %s159 = smul.addr %s158, 4
        %s160 = scalar_lea.vmem %s0, %s159
        %s161 = smul.u32 8, %s10
      $region32: #{spectrogram_encoder.7} parent=27 // pred_fallthru
        _
    $region28: #{spectrogram_encoder.7} parent=5 // pred_fallthru
      _
    %p162 = scmp.le.s32.totalorder 1, %s10
    %p163 = scmp.lt.s32.totalorder %s10, 3
    %p164 = pnand %p162, %p163
    %p165 = pneg %p164
    // Predicated region
    $region33: #{spectrogram_encoder.7} parent=5 // pred_check
      _
    $region34: #{spectrogram_encoder.7} parent=5 // pred_check_branch
      %167 = sbr.rel (%p164) target = $region36
    $region35: #{spectrogram_encoder.7} parent=5 // pred_region
      %s168 = ssub.s32 %s10, 1
      %s169 = smul.u32 8, %s15
      %p170 = scmp.lt.s32.totalorder %s169, 15
      %s171 = scalar_select %p170, %s169, 15
      %s172 = smul.addr %s171, 4
      %s173 = scalar_lea.vmem %s0, %s172
      %p174 = pneg %p36
      %p175 = pneg %p33
      %p176 = pneg %p57
      %p177 = pneg %p54
      %p178 = pneg %p78
      %p179 = pneg %p75
      %p180 = pneg %p99
      %p181 = pneg %p96
      %p182 = pneg %p125
      %p183 = pneg %p122
      %s184 = smul.u32 8, %s15
      %p185 = scmp.lt.s32.totalorder %s184, 15
      %s186 = scalar_select %p185, %s184, 15
      %s187 = smul.addr %s186, 4
      %s188 = scalar_lea.vmem %s4, %s187
      %s189 = smul.u32 8, %s15
      %p190 = scmp.lt.s32.totalorder %s189, 15
      %s191 = scalar_select %p190, %s189, 15
      %s192 = smul.addr %s191, 4
      %s193 = scalar_lea.vmem %s0, %s192
      %s194 = smul.u32 8, %s15
      %s195 = smul.u32 8, %s15
      %p196 = scmp.lt.s32.totalorder %s195, 15
      %s197 = scalar_select %p196, %s195, 15
      %s198 = smul.addr %s197, 4
      %s199 = scalar_lea.vmem %s4, %s198
      %s200 = smul.u32 8, %s15
      %v202 = vld [vmem:[%s1] sm:$0xf]
      %v203 = vld [vmem:[%s1 + $0x4] sm:$0x1]
      %v204 = vld [vmem:[%s2] sm:$0x1]
      %v205 = vld [vmem:[%s3] sm:$0x1]
      %v206 = vld [vmem:[%s193] sm:$0xf]
      %v207 = vld [vmem:[%s193 + $0x4] sm:$0xf]
      %v208 = vld [vmem:[%s193 + $0x8] sm:$0xf]
      %v209 = vld [vmem:[%s193 + $0xc] sm:$0xf]
      %v210 = vld [vmem:[%s193 + $0x10] sm:$0xf]
      %v211 = vld [vmem:[%s193 + $0x14] sm:$0xf]
      %v212 = vld [vmem:[%s193 + $0x18] sm:$0xf]
      %v213 = vld [vmem:[%s193 + $0x1c] sm:$0xf]
      %v222 = vunpack.c.l.b16 %v206
      %v223 = vunpack.c.l.b16 %v207
      %v224 = vunpack.c.l.b16 %v208
      %v225 = vunpack.c.l.b16 %v209
      %v226 = vunpack.c.l.b16 %v210
      %v227 = vunpack.c.l.b16 %v211
      %v228 = vunpack.c.l.b16 %v212
      %v229 = vunpack.c.l.b16 %v213
      %v230 = vpack.c.b16 %v223, %v222
      %v231 = vpack.c.b16 %v225, %v224
      %v232 = vpack.c.b16 %v227, %v226
      %v233 = vpack.c.b16 %v229, %v228
      %v236 = vunpack.c.l.b16 %v202
      %v237 = vunpack.c.l.b16 %v203
      %v238 = vpack.c.b16 %v237, %v236
      %vm239 = vcmask 72704
      %v241 = vsel %vm239, %v230, 0
      %v244 = vsel %vm239, %v231, 0
      %v247 = vsel %vm239, %v232, 0
      %v250 = vsel %vm239, %v233, 0
      %vm252 = vcmask 1043456
      %vm253 = vcmask 1044480
      %v254 = vsel %vm252, 4294967295, 65535
      %v255 = vsel %vm253, %v254, 0
      %v257 = vand.u32 %v238, %v255
      %259 = vmatpush.bf16.msra.mxu0 0
      %260 = vmatpush.bf16.msra.mxu0 0
      %261 = vmatpush.bf16.msra.mxu0 0
      %262 = vmatpush.bf16.msra.mxu0 0
      %263 = vmatpush.bf16.msra.mxu0 0
      %264 = vmatpush.bf16.msra.mxu0 0
      %265 = vmatpush.bf16.msra.mxu0 0
      %266 = vmatpush.bf16.msra.mxu0 %v257
      %267 = vmatmul.bf16.gmra.mxu0 %v241
      %v268 = vpop.f32.mrf.mxu0
      %v269 = vadd.f32 0.0, %v268
      %v270 = vpop.f32.mrf.mxu0
      %v271 = vadd.f32 0.0, %v270
      %272 = vmatmul.bf16.gmra.mxu0 %v244
      %v273 = vpop.f32.mrf.mxu0
      %v274 = vadd.f32 0.0, %v273
      %v275 = vpop.f32.mrf.mxu0
      %v276 = vadd.f32 0.0, %v275
      %277 = vmatmul.bf16.gmra.mxu0 %v247
      %v278 = vpop.f32.mrf.mxu0
      %v279 = vadd.f32 0.0, %v278
      %v280 = vpop.f32.mrf.mxu0
      %v281 = vadd.f32 0.0, %v280
      %282 = vmatmul.bf16.gmra.mxu0 %v250
      %v283 = vpop.f32.mrf.mxu0
      %v284 = vadd.f32 0.0, %v283
      %v285 = vpop.f32.mrf.mxu0
      %v286 = vadd.f32 0.0, %v285
      %287 = vdwg.mxu0
      %v289 = vperm.slane %v204, 0
      %v291 = vmul.f32 %v269, %v289
      %v292 = vmul.f32 %v271, %v289
      %v293 = vmul.f32 %v274, %v289
      %v294 = vmul.f32 %v276, %v289
      %v295 = vmul.f32 %v279, %v289
      %v296 = vmul.f32 %v281, %v289
      %v297 = vmul.f32 %v284, %v289
      %v298 = vmul.f32 %v286, %v289
      %v300 = vperm.slane %v205, 0
      %v302 = vadd.f32 %v291, %v300
      %v303 = vadd.f32 %v292, %v300
      %v304 = vadd.f32 %v293, %v300
      %v305 = vadd.f32 %v294, %v300
      %v306 = vadd.f32 %v295, %v300
      %v307 = vadd.f32 %v296, %v300
      %v308 = vadd.f32 %v297, %v300
      %v309 = vadd.f32 %v298, %v300
      %v310 = vmax.f32 %v302, 0.0
      %v311 = vmax.f32 %v303, 0.0
      %v312 = vmax.f32 %v304, 0.0
      %v313 = vmax.f32 %v305, 0.0
      %v314 = vmax.f32 %v306, 0.0
      %v315 = vmax.f32 %v307, 0.0
      %v316 = vmax.f32 %v308, 0.0
      %v317 = vmax.f32 %v309, 0.0
      %v318 = vpack.c.bf16 %v310, %v310
      %v319 = vpack.c.bf16 %v311, %v311
      %v320 = vpack.c.bf16 %v312, %v312
      %v321 = vpack.c.bf16 %v313, %v313
      %v322 = vpack.c.bf16 %v314, %v314
      %v323 = vpack.c.bf16 %v315, %v315
      %v324 = vpack.c.bf16 %v316, %v316
      %v325 = vpack.c.bf16 %v317, %v317
      %vm326 = vcmask 519168
      %327 = vst.msk [vmem:[%s199] sm:$0xf] %vm326, %v318
      %328 = vst.msk [vmem:[%s199 + $0x4] sm:$0xf] %vm326, %v319
      %329 = vst.msk [vmem:[%s199 + $0x8] sm:$0xf] %vm326, %v320
      %330 = vst.msk [vmem:[%s199 + $0xc] sm:$0xf] %vm326, %v321
      %331 = vst.msk [vmem:[%s199 + $0x10] sm:$0xf] %vm326, %v322
      %332 = vst.msk [vmem:[%s199 + $0x14] sm:$0xf] %vm326, %v323
      %333 = vst.msk [vmem:[%s199 + $0x18] sm:$0xf] %vm326, %v324
      %334 = vst.msk [vmem:[%s199 + $0x1c] sm:$0xf] %vm326, %v325
      %s335 = smul.u32 8, %s15
      %p336 = scmp.lt.s32.totalorder %s335, 15
      %s337 = scalar_select %p336, %s335, 15
      %s338 = smul.addr %s337, 4
      %s339 = scalar_lea.vmem %s4, %s338
      // Predicated region
      $region37: #{spectrogram_encoder.7} parent=35 // pred_check
        %p340 = pneg %p122
      $region38: #{spectrogram_encoder.7} parent=35 // pred_check_branch
        %342 = sbr.rel (%p340) target = $region40
      $region39: #{spectrogram_encoder.7} parent=35 // pred_region
        %s343 = smul.u32 8, %s15
      $region40: #{spectrogram_encoder.7} parent=35 // pred_fallthru
        _
    $region36: #{spectrogram_encoder.7} parent=5 // pred_fallthru
      _
    %p344 = scmp.le.s32.totalorder 2, %s10
    // Predicated region
    $region41: #{spectrogram_encoder.7} parent=5 // pred_check
      %p345 = pneg %p344
    $region42: #{spectrogram_encoder.7} parent=5 // pred_check_branch
      %347 = sbr.rel (%p345) target = $region44
    $region43: #{spectrogram_encoder.7} parent=5 // pred_region
      %s348 = ssub.s32 %s10, 2
      // Predicated region
      $region45: #{spectrogram_encoder.7} parent=43 // pred_check
        %p349 = pneg %p128
      $region46: #{spectrogram_encoder.7} parent=43 // pred_check_branch
        %351 = sbr.rel (%p349) target = $region48
      $region47: #{spectrogram_encoder.7} parent=43 // pred_region
        %s352 = smul.u32 8, %s16
        %p353 = scmp.lt.s32.totalorder %s352, 15
        %s354 = scalar_select %p353, %s352, 15
        %s355 = smul.addr %s354, 4
        %s356 = scalar_lea.vmem %s4, %s355
      $region48: #{spectrogram_encoder.7} parent=43 // pred_fallthru
        _
    $region44: #{spectrogram_encoder.7} parent=5 // pred_fallthru
      _
  $region6: #{spectrogram_encoder.7} parent=0 // loop_footer
    %s14 = sadd.s32 1, %s10
  $region7: #{spectrogram_encoder.7} parent=0 // loop_footer_branch
    %9 = sbr.rel target = $region3
  $region8: #{spectrogram_encoder.7} parent=0 // loop_exit
    _

// kernel: spectrogram_encoder.6
$region0: #{spectrogram_encoder.6}
  #allocation0 [shape = 'u32[]', space=smem, size = 0x4, offset = 0x4, fixed_abs, tag = 'smem constant byte address 0x4 - core index']
  #allocation1 [shape = 'u32[72,128]{1,0:T(1,128)}', space=vmem, size = 0x9000, scoped, tag = 'internal scratch']
  %s0 = inlined_call_operand.vmem [shape: bf16[128,9], index: 0, kind: input, shape index: {}]
  %s1 = inlined_call_operand.vmem [shape: bf16[9,64], index: 1, kind: input, shape index: {}]
  %s2 = inlined_call_operand.vmem [shape: f32[16,64], index: 2, kind: output, shape index: {}]
  %s3 = sld [smem:[#allocation0]]
  $region41: #{spectrogram_encoder.6} parent=0
    _
  %s5 = ssub.s32 1, %s3
  %s6 = scalar_select 0, %s5, %s3
  loop: start=0, step=1, limit=4
  $region2: #{spectrogram_encoder.6} parent=0 // loop_pre_header
    _
  $region3: #{spectrogram_encoder.6} parent=0 // loop_header
    %s8 = sphi 0, %s12
    %p9 = scmp.ge.s32.totalorder %s8, 4
    %s18 = sphi 0, %s20
    %s21 = sphi 0, %s18
    %s22 = sphi 0, %s21
    %s38 = sphi 0, %s22
    %s42 = sphi 0, %s42
    %s44 = sphi 0, %s42
    %s45 = sphi 0, %s44
    %s59 = sphi 0, %s45
    %s65 = sphi 0, %s67
    %s68 = sphi 0, %s65
    %s69 = sphi 0, %s68
    %s85 = sphi 0, %s69
  $region4: #{spectrogram_encoder.6} parent=0 // loop_header_branch
    %11 = sbr.rel (%p9) target = $region8
  $region5: #{spectrogram_encoder.6} parent=0 // loop_body
    %s13 = ssub.s32 %s8, 1
    %s14 = ssub.s32 %s8, 2
    %s15 = sadd.s32 %s8, 1
    %s16 = ssub.s32 %s8, %s15
    %p17 = scmp.eq.s32.totalorder %s16, 0
    %s19 = sadd.s32 %s18, 1
    %s20 = scalar_select %p17, %s18, %s19
    %p23 = pneg %p17
    %p24 = scmp.eq.s32.totalorder %s8, 1
    %p25 = por %p23, %p24
    %p26 = scmp.ne.s32.totalorder %s18, %s21
    %p27 = scmp.eq.s32.totalorder %s8, 0
    %p28 = por %p26, %p27
    %p29 = scmp.ne.s32.totalorder %s18, %s21
    %p30 = scmp.eq.s32.totalorder %s13, 1
    %p31 = por %p29, %p30
    %p32 = scmp.ne.s32.totalorder %s21, %s22
    %p33 = scmp.eq.s32.totalorder %s13, 0
    %p34 = por %p32, %p33
    %p35 = scmp.ne.s32.totalorder %s21, %s22
    %p36 = scmp.eq.s32.totalorder %s14, 1
    %p37 = por %p35, %p36
    %p39 = scmp.ne.s32.totalorder %s22, %s38
    %p40 = scmp.eq.s32.totalorder %s14, 0
    %p41 = por %p39, %p40
    %s43 = sadd.s32 %s42, 1
    %p46 = scmp.eq.s32.totalorder %s8, 1
    %p47 = scmp.ne.s32.totalorder %s42, %s44
    %p48 = scmp.eq.s32.totalorder %s8, 0
    %p49 = por %p47, %p48
    %p50 = scmp.ne.s32.totalorder %s42, %s44
    %p51 = scmp.eq.s32.totalorder %s13, 1
    %p52 = por %p50, %p51
    %p53 = scmp.ne.s32.totalorder %s44, %s45
    %p54 = scmp.eq.s32.totalorder %s13, 0
    %p55 = por %p53, %p54
    %p56 = scmp.ne.s32.totalorder %s44, %s45
    %p57 = scmp.eq.s32.totalorder %s14, 1
    %p58 = por %p56, %p57
    %p60 = scmp.ne.s32.totalorder %s45, %s59
    %p61 = scmp.eq.s32.totalorder %s14, 0
    %p62 = por %p60, %p61
    %s63 = ssub.s32 %s8, %s15
    %p64 = scmp.eq.s32.totalorder %s63, 0
    %s66 = sadd.s32 %s65, 1
    %s67 = scalar_select %p64, %s65, %s66
    %p70 = pneg %p64
    %p71 = scmp.eq.s32.totalorder %s8, 1
    %p72 = por %p70, %p71
    %p73 = scmp.ne.s32.totalorder %s65, %s68
    %p74 = scmp.eq.s32.totalorder %s8, 0
    %p75 = por %p73, %p74
    %p76 = scmp.ne.s32.totalorder %s65, %s68
    %p77 = scmp.eq.s32.totalorder %s13, 1
    %p78 = por %p76, %p77
    %p79 = scmp.ne.s32.totalorder %s68, %s69
    %p80 = scmp.eq.s32.totalorder %s13, 0
    %p81 = por %p79, %p80
    %p82 = scmp.ne.s32.totalorder %s68, %s69
    %p83 = scmp.eq.s32.totalorder %s14, 1
    %p84 = por %p82, %p83
    %p86 = scmp.ne.s32.totalorder %s69, %s85
    %p87 = scmp.eq.s32.totalorder %s14, 0
    %p88 = por %p86, %p87
    %p89 = scmp.le.s32.totalorder 1, %s8
    %p90 = scmp.lt.s32.totalorder %s8, 3
    %p91 = pnand %p89, %p90
    %p92 = pneg %p91
    // Predicated region
    $region9: #{spectrogram_encoder.6} parent=5 // pred_check
      _
    $region10: #{spectrogram_encoder.6} parent=5 // pred_check_branch
      %94 = sbr.rel (%p91) target = $region12
    $region11: #{spectrogram_encoder.6} parent=5 // pred_region
      %s95 = ssub.s32 %s8, 1
      // Predicated region
      $region13: #{spectrogram_encoder.6} parent=11 // pred_check
        %p96 = pneg %p55
      $region14: #{spectrogram_encoder.6} parent=11 // pred_check_branch
        %98 = sbr.rel (%p96) target = $region16
      $region15: #{spectrogram_encoder.6} parent=11 // pred_region
        _
      $region16: #{spectrogram_encoder.6} parent=11 // pred_fallthru
        _
    $region12: #{spectrogram_encoder.6} parent=5 // pred_fallthru
      _
    %p99 = scmp.lt.s32.totalorder %s8, 2
    // Predicated region
    $region17: #{spectrogram_encoder.6} parent=5 // pred_check
      %p100 = pneg %p99
    $region18: #{spectrogram_encoder.6} parent=5 // pred_check_branch
      %102 = sbr.rel (%p100) target = $region20
    $region19: #{spectrogram_encoder.6} parent=5 // pred_region
      // Predicated region
      $region21: #{spectrogram_encoder.6} parent=19 // pred_check
        %p103 = pneg %p28
      $region22: #{spectrogram_encoder.6} parent=19 // pred_check_branch
        %105 = sbr.rel (%p103) target = $region24
      $region23: #{spectrogram_encoder.6} parent=19 // pred_region
        %s106 = smul.u32 8, %s8
        %p107 = scmp.lt.s32.totalorder %s106, 15
        %s108 = scalar_select %p107, %s106, 15
        %s109 = smul.addr %s108, 4
        %s110 = scalar_lea.vmem %s0, %s109
        %s111 = smul.u32 8, %s8
      $region24: #{spectrogram_encoder.6} parent=19 // pred_fallthru
        _
    $region20: #{spectrogram_encoder.6} parent=5 // pred_fallthru
      _
    %p112 = scmp.le.s32.totalorder 1, %s8
    %p113 = scmp.lt.s32.totalorder %s8, 3
    %p114 = pnand %p112, %p113
    %p115 = pneg %p114
    // Predicated region
    $region25: #{spectrogram_encoder.6} parent=5 // pred_check
      _
    $region26: #{spectrogram_encoder.6} parent=5 // pred_check_branch
      %117 = sbr.rel (%p114) target = $region28
    $region27: #{spectrogram_encoder.6} parent=5 // pred_region
      %s118 = ssub.s32 %s8, 1
      %s119 = smul.u32 8, %s13
      %p120 = scmp.lt.s32.totalorder %s119, 15
      %s121 = scalar_select %p120, %s119, 15
      %s122 = smul.addr %s121, 4
      %s123 = scalar_lea.vmem %s0, %s122
      %p124 = pneg %p34
      %p125 = pneg %p31
      %p126 = pneg %p55
      %p127 = pneg %p52
      %p128 = pneg %p81
      %p129 = pneg %p78
      %p130 = scmp.lt.s32.totalorder %s13, 1
      %s131 = scalar_select %p130, %s13, 1
      %s132 = smul.addr %s131, 8
      %s133 = scalar_lea.vmem %s2, %s132
      %s134 = smul.u32 8, %s13
      %p135 = scmp.lt.s32.totalorder %s134, 15
      %s136 = scalar_select %p135, %s134, 15
      %s137 = smul.addr %s136, 4
      %s138 = scalar_lea.vmem %s0, %s137
      %s139 = smul.u32 8, %s13
      %p140 = scmp.lt.s32.totalorder %s13, 1
      %s141 = scalar_select %p140, %s13, 1
      %s142 = smul.addr %s141, 8
      %s143 = scalar_lea.vmem %s2, %s142
      %v145 = vld [vmem:[%s1] sm:$0xf]
      %v146 = vld [vmem:[%s1 + $0x4] sm:$0x1]
      %v147 = vld [vmem:[%s138] sm:$0xf]
      %v148 = vld [vmem:[%s138 + $0x4] sm:$0xf]
      %v149 = vld [vmem:[%s138 + $0x8] sm:$0xf]
      %v150 = vld [vmem:[%s138 + $0xc] sm:$0xf]
      %v151 = vld [vmem:[%s138 + $0x10] sm:$0xf]
      %v152 = vld [vmem:[%s138 + $0x14] sm:$0xf]
      %v153 = vld [vmem:[%s138 + $0x18] sm:$0xf]
      %v154 = vld [vmem:[%s138 + $0x1c] sm:$0xf]
      %v163 = vunpack.c.l.b16 %v147
      %v164 = vunpack.c.l.b16 %v148
      %v165 = vunpack.c.l.b16 %v149
      %v166 = vunpack.c.l.b16 %v150
      %v167 = vunpack.c.l.b16 %v151
      %v168 = vunpack.c.l.b16 %v152
      %v169 = vunpack.c.l.b16 %v153
      %v170 = vunpack.c.l.b16 %v154
      %v171 = vpack.c.b16 %v164, %v163
      %v172 = vpack.c.b16 %v166, %v165
      %v173 = vpack.c.b16 %v168, %v167
      %v174 = vpack.c.b16 %v170, %v169
      %v177 = vunpack.c.l.b16 %v145
      %v178 = vunpack.c.l.b16 %v146
      %v179 = vpack.c.b16 %v178, %v177
      %vm180 = vcmask 72704
      %v182 = vsel %vm180, %v171, 0
      %v185 = vsel %vm180, %v172, 0
      %v188 = vsel %vm180, %v173, 0
      %v191 = vsel %vm180, %v174, 0
      %vm193 = vcmask 1043456
      %vm194 = vcmask 1044480
      %v195 = vsel %vm193, 4294967295, 65535
      %v196 = vsel %vm194, %v195, 0
      %v198 = vand.u32 %v179, %v196
      %200 = vmatpush.bf16.msra.mxu0 0
      %201 = vmatpush.bf16.msra.mxu0 0
      %202 = vmatpush.bf16.msra.mxu0 0
      %203 = vmatpush.bf16.msra.mxu0 0
      %204 = vmatpush.bf16.msra.mxu0 0
      %205 = vmatpush.bf16.msra.mxu0 0
      %206 = vmatpush.bf16.msra.mxu0 0
      %207 = vmatpush.bf16.msra.mxu0 %v198
      %208 = vmatmul.bf16.gmra.mxu0 %v182
      %v209 = vpop.f32.mrf.mxu0
      %v210 = vadd.f32 0.0, %v209
      %v211 = vpop.f32.mrf.mxu0
      %v212 = vadd.f32 0.0, %v211
      %213 = vmatmul.bf16.gmra.mxu0 %v185
      %v214 = vpop.f32.mrf.mxu0
      %v215 = vadd.f32 0.0, %v214
      %v216 = vpop.f32.mrf.mxu0
      %v217 = vadd.f32 0.0, %v216
      %218 = vmatmul.bf16.gmra.mxu0 %v188
      %v219 = vpop.f32.mrf.mxu0
      %v220 = vadd.f32 0.0, %v219
      %v221 = vpop.f32.mrf.mxu0
      %v222 = vadd.f32 0.0, %v221
      %223 = vmatmul.bf16.gmra.mxu0 %v191
      %v224 = vpop.f32.mrf.mxu0
      %v225 = vadd.f32 0.0, %v224
      %v226 = vpop.f32.mrf.mxu0
      %v227 = vadd.f32 0.0, %v226
      %228 = vdwg.mxu0
      %vm229 = vcmask 523264
      %v230 = vsel %vm229, %v210, 0.0
      %v231 = vsel %vm229, %v212, 0.0
      %v232 = vadd.f32 %v230, %v231
      %v233 = vsel %vm229, %v215, 0.0
      %v234 = vadd.f32 %v232, %v233
      %v235 = vsel %vm229, %v217, 0.0
      %v236 = vadd.f32 %v234, %v235
      %v237 = vsel %vm229, %v220, 0.0
      %v238 = vadd.f32 %v236, %v237
      %v239 = vsel %vm229, %v222, 0.0
      %v240 = vadd.f32 %v238, %v239
      %v241 = vsel %vm229, %v225, 0.0
      %v242 = vadd.f32 %v240, %v241
      %v243 = vsel %vm229, %v227, 0.0
      %v244 = vadd.f32 %v242, %v243
      %v245 = vrot.slane %v244, 4
      %v246 = vadd.f32 %v244, %v245
      %v247 = vrot.slane %v246, 2
      %v248 = vadd.f32 %v246, %v247
      %v249 = vrot.slane %v248, 1
      %v250 = vadd.f32 %v248, %v249
      %v251 = vadd.f32 %v250, 0.0
      %v252 = vmul.f32 %v210, %v210
      %v253 = vmul.f32 %v212, %v212
      %v254 = vmul.f32 %v215, %v215
      %v255 = vmul.f32 %v217, %v217
      %v256 = vmul.f32 %v220, %v220
      %v257 = vmul.f32 %v222, %v222
      %v258 = vmul.f32 %v225, %v225
      %v259 = vmul.f32 %v227, %v227
      %v260 = vsel %vm229, %v252, 0.0
      %v261 = vsel %vm229, %v253, 0.0
      %v262 = vadd.f32 %v260, %v261
      %v263 = vsel %vm229, %v254, 0.0
      %v264 = vadd.f32 %v262, %v263
      %v265 = vsel %vm229, %v255, 0.0
      %v266 = vadd.f32 %v264, %v265
      %v267 = vsel %vm229, %v256, 0.0
      %v268 = vadd.f32 %v266, %v267
      %v269 = vsel %vm229, %v257, 0.0
      %v270 = vadd.f32 %v268, %v269
      %v271 = vsel %vm229, %v258, 0.0
      %v272 = vadd.f32 %v270, %v271
      %v273 = vsel %vm229, %v259, 0.0
      %v274 = vadd.f32 %v272, %v273
      %v275 = vrot.slane %v274, 4
      %v276 = vadd.f32 %v274, %v275
      %v277 = vrot.slane %v276, 2
      %v278 = vadd.f32 %v276, %v277
      %v279 = vrot.slane %v278, 1
      %v280 = vadd.f32 %v278, %v279
      %v281 = vadd.f32 %v280, 0.0
      %vm282 = vcmask 516096
      %283 = vst.msk [vmem:[%s143] sm:$0x1] %vm282, %v251
      %284 = vst.msk [vmem:[%s143 + $0x1] sm:$0x1] %vm282, %v281
      %p285 = scmp.lt.s32.totalorder %s13, 1
      %s286 = scalar_select %p285, %s13, 1
      %s287 = smul.addr %s286, 8
      %s288 = scalar_lea.vmem %s2, %s287
      // Predicated region
      $region29: #{spectrogram_encoder.6} parent=27 // pred_check
        %p289 = pneg %p78
      $region30: #{spectrogram_encoder.6} parent=27 // pred_check_branch
        %291 = sbr.rel (%p289) target = $region32
      $region31: #{spectrogram_encoder.6} parent=27 // pred_region
        _
      $region32: #{spectrogram_encoder.6} parent=27 // pred_fallthru
        _
    $region28: #{spectrogram_encoder.6} parent=5 // pred_fallthru
      _
    %p292 = scmp.le.s32.totalorder 2, %s8
    // Predicated region
    $region33: #{spectrogram_encoder.6} parent=5 // pred_check
      %p293 = pneg %p292
    $region34: #{spectrogram_encoder.6} parent=5 // pred_check_branch
      %295 = sbr.rel (%p293) target = $region36
    $region35: #{spectrogram_encoder.6} parent=5 // pred_region
      %s296 = ssub.s32 %s8, 2
      // Predicated region
      $region37: #{spectrogram_encoder.6} parent=35 // pred_check
        %p297 = pneg %p84
      $region38: #{spectrogram_encoder.6} parent=35 // pred_check_branch
        %299 = sbr.rel (%p297) target = $region40
      $region39: #{spectrogram_encoder.6} parent=35 // pred_region
        %p300 = scmp.lt.s32.totalorder %s14, 1
        %s301 = scalar_select %p300, %s14, 1
        %s302 = smul.addr %s301, 8
        %s303 = scalar_lea.vmem %s2, %s302
      $region40: #{spectrogram_encoder.6} parent=35 // pred_fallthru
        _
    $region36: #{spectrogram_encoder.6} parent=5 // pred_fallthru
      _
  $region6: #{spectrogram_encoder.6} parent=0 // loop_footer
    %s12 = sadd.s32 1, %s8
  $region7: #{spectrogram_encoder.6} parent=0 // loop_footer_branch
    %7 = sbr.rel target = $region3
  $region8: #{spectrogram_encoder.6} parent=0 // loop_exit
    _

// kernel: spectrogram_encoder.9
$region0: #{spectrogram_encoder.9}
  #allocation0 [shape = 'u32[]', space=smem, size = 0x4, offset = 0x4, fixed_abs, tag = 'smem constant byte address 0x4 - core index']
  #allocation1 [shape = 'u32[72,128]{1,0:T(1,128)}', space=vmem, size = 0x9000, scoped, tag = 'internal scratch']
  %s0 = inlined_call_operand.vmem [shape: bf16[32,128], index: 0, kind: input, shape index: {}]
  %s1 = inlined_call_operand.vmem [shape: f32[1,128], index: 1, kind: input, shape index: {}]
  %s2 = inlined_call_operand.vmem [shape: f32[1,128], index: 2, kind: input, shape index: {}]
  %s3 = inlined_call_operand.vmem [shape: bf16[32,128], index: 3, kind: output, shape index: {}]
  %s4 = sld [smem:[#allocation0]]
  $region45: #{spectrogram_encoder.9} parent=0
    _
  %s6 = ssub.s32 1, %s4
  %s7 = scalar_select 0, %s6, %s4
  loop: start=0, step=1, limit=4
  $region2: #{spectrogram_encoder.9} parent=0 // loop_pre_header
    _
  $region3: #{spectrogram_encoder.9} parent=0 // loop_header
    %s9 = sphi 0, %s13
    %p10 = scmp.ge.s32.totalorder %s9, 4
    %s19 = sphi 0, %s21
    %s22 = sphi 0, %s19
    %s23 = sphi 0, %s22
    %s39 = sphi 0, %s23
    %s43 = sphi 0, %s43
    %s45 = sphi 0, %s43
    %s46 = sphi 0, %s45
    %s60 = sphi 0, %s46
    %s64 = sphi 0, %s64
    %s66 = sphi 0, %s64
    %s67 = sphi 0, %s66
    %s81 = sphi 0, %s67
    %s87 = sphi 0, %s89
    %s90 = sphi 0, %s87
    %s91 = sphi 0, %s90
    %s107 = sphi 0, %s91
  $region4: #{spectrogram_encoder.9} parent=0 // loop_header_branch
    %12 = sbr.rel (%p10) target = $region8
  $region5: #{spectrogram_encoder.9} parent=0 // loop_body
    %s14 = ssub.s32 %s9, 1
    %s15 = ssub.s32 %s9, 2
    %s16 = sadd.s32 %s9, 1
    %s17 = ssub.s32 %s9, %s16
    %p18 = scmp.eq.s32.totalorder %s17, 0
    %s20 = sadd.s32 %s19, 1
    %s21 = scalar_select %p18, %s19, %s20
    %p24 = pneg %p18
    %p25 = scmp.eq.s32.totalorder %s9, 1
    %p26 = por %p24, %p25
    %p27 = scmp.ne.s32.totalorder %s19, %s22
    %p28 = scmp.eq.s32.totalorder %s9, 0
    %p29 = por %p27, %p28
    %p30 = scmp.ne.s32.totalorder %s19, %s22
    %p31 = scmp.eq.s32.totalorder %s14, 1
    %p32 = por %p30, %p31
    %p33 = scmp.ne.s32.totalorder %s22, %s23
    %p34 = scmp.eq.s32.totalorder %s14, 0
    %p35 = por %p33, %p34
    %p36 = scmp.ne.s32.totalorder %s22, %s23
    %p37 = scmp.eq.s32.totalorder %s15, 1
    %p38 = por %p36, %p37
    %p40 = scmp.ne.s32.totalorder %s23, %s39
    %p41 = scmp.eq.s32.totalorder %s15, 0
    %p42 = por %p40, %p41
    %s44 = sadd.s32 %s43, 1
    %p47 = scmp.eq.s32.totalorder %s9, 1
    %p48 = scmp.ne.s32.totalorder %s43, %s45
    %p49 = scmp.eq.s32.totalorder %s9, 0
    %p50 = por %p48, %p49
    %p51 = scmp.ne.s32.totalorder %s43, %s45
    %p52 = scmp.eq.s32.totalorder %s14, 1
    %p53 = por %p51, %p52
    %p54 = scmp.ne.s32.totalorder %s45, %s46
    %p55 = scmp.eq.s32.totalorder %s14, 0
    %p56 = por %p54, %p55
    %p57 = scmp.ne.s32.totalorder %s45, %s46
    %p58 = scmp.eq.s32.totalorder %s15, 1
    %p59 = por %p57, %p58
    %p61 = scmp.ne.s32.totalorder %s46, %s60
    %p62 = scmp.eq.s32.totalorder %s15, 0
    %p63 = por %p61, %p62
    %s65 = sadd.s32 %s64, 1
    %p68 = scmp.eq.s32.totalorder %s9, 1
    %p69 = scmp.ne.s32.totalorder %s64, %s66
    %p70 = scmp.eq.s32.totalorder %s9, 0
    %p71 = por %p69, %p70
    %p72 = scmp.ne.s32.totalorder %s64, %s66
    %p73 = scmp.eq.s32.totalorder %s14, 1
    %p74 = por %p72, %p73
    %p75 = scmp.ne.s32.totalorder %s66, %s67
    %p76 = scmp.eq.s32.totalorder %s14, 0
    %p77 = por %p75, %p76
    %p78 = scmp.ne.s32.totalorder %s66, %s67
    %p79 = scmp.eq.s32.totalorder %s15, 1
    %p80 = por %p78, %p79
    %p82 = scmp.ne.s32.totalorder %s67, %s81
    %p83 = scmp.eq.s32.totalorder %s15, 0
    %p84 = por %p82, %p83
    %s85 = ssub.s32 %s9, %s16
    %p86 = scmp.eq.s32.totalorder %s85, 0
    %s88 = sadd.s32 %s87, 1
    %s89 = scalar_select %p86, %s87, %s88
    %p92 = pneg %p86
    %p93 = scmp.eq.s32.totalorder %s9, 1
    %p94 = por %p92, %p93
    %p95 = scmp.ne.s32.totalorder %s87, %s90
    %p96 = scmp.eq.s32.totalorder %s9, 0
    %p97 = por %p95, %p96
    %p98 = scmp.ne.s32.totalorder %s87, %s90
    %p99 = scmp.eq.s32.totalorder %s14, 1
    %p100 = por %p98, %p99
    %p101 = scmp.ne.s32.totalorder %s90, %s91
    %p102 = scmp.eq.s32.totalorder %s14, 0
    %p103 = por %p101, %p102
    %p104 = scmp.ne.s32.totalorder %s90, %s91
    %p105 = scmp.eq.s32.totalorder %s15, 1
    %p106 = por %p104, %p105
    %p108 = scmp.ne.s32.totalorder %s91, %s107
    %p109 = scmp.eq.s32.totalorder %s15, 0
    %p110 = por %p108, %p109
    %p111 = scmp.le.s32.totalorder 1, %s9
    %p112 = scmp.lt.s32.totalorder %s9, 3
    %p113 = pnand %p111, %p112
    %p114 = pneg %p113
    // Predicated region
    $region9: #{spectrogram_encoder.9} parent=5 // pred_check
      _
    $region10: #{spectrogram_encoder.9} parent=5 // pred_check_branch
      %116 = sbr.rel (%p113) target = $region12
    $region11: #{spectrogram_encoder.9} parent=5 // pred_region
      %s117 = ssub.s32 %s9, 1
      // Predicated region
      $region13: #{spectrogram_encoder.9} parent=11 // pred_check
        %p118 = pneg %p56
      $region14: #{spectrogram_encoder.9} parent=11 // pred_check_branch
        %120 = sbr.rel (%p118) target = $region16
      $region15: #{spectrogram_encoder.9} parent=11 // pred_region
        _
      $region16: #{spectrogram_encoder.9} parent=11 // pred_fallthru
        _
      // Predicated region
      $region17: #{spectrogram_encoder.9} parent=11 // pred_check
        %p121 = pneg %p77
      $region18: #{spectrogram_encoder.9} parent=11 // pred_check_branch
        %123 = sbr.rel (%p121) target = $region20
      $region19: #{spectrogram_encoder.9} parent=11 // pred_region
        _
      $region20: #{spectrogram_encoder.9} parent=11 // pred_fallthru
        _
    $region12: #{spectrogram_encoder.9} parent=5 // pred_fallthru
      _
    %p124 = scmp.lt.s32.totalorder %s9, 2
    // Predicated region
    $region21: #{spectrogram_encoder.9} parent=5 // pred_check
      %p125 = pneg %p124
    $region22: #{spectrogram_encoder.9} parent=5 // pred_check_branch
      %127 = sbr.rel (%p125) target = $region24
    $region23: #{spectrogram_encoder.9} parent=5 // pred_region
      // Predicated region
      $region25: #{spectrogram_encoder.9} parent=23 // pred_check
        %p128 = pneg %p29
      $region26: #{spectrogram_encoder.9} parent=23 // pred_check_branch
        %130 = sbr.rel (%p128) target = $region28
      $region27: #{spectrogram_encoder.9} parent=23 // pred_region
        %s131 = smul.u32 2, %s9
        %p132 = scmp.lt.s32.totalorder %s131, 3
        %s133 = scalar_select %p132, %s131, 3
        %s134 = smul.addr %s133, 4
        %s135 = scalar_lea.vmem %s0, %s134
        %s136 = smul.u32 2, %s9
      $region28: #{spectrogram_encoder.9} parent=23 // pred_fallthru
        _
    $region24: #{spectrogram_encoder.9} parent=5 // pred_fallthru
      _
    %p137 = scmp.le.s32.totalorder 1, %s9
    %p138 = scmp.lt.s32.totalorder %s9, 3
    %p139 = pnand %p137, %p138
    %p140 = pneg %p139
    // Predicated region
    $region29: #{spectrogram_encoder.9} parent=5 // pred_check
      _
    $region30: #{spectrogram_encoder.9} parent=5 // pred_check_branch
      %142 = sbr.rel (%p139) target = $region32
    $region31: #{spectrogram_encoder.9} parent=5 // pred_region
      %s143 = ssub.s32 %s9, 1
      %s144 = smul.u32 2, %s14
      %p145 = scmp.lt.s32.totalorder %s144, 3
      %s146 = scalar_select %p145, %s144, 3
      %s147 = smul.addr %s146, 4
      %s148 = scalar_lea.vmem %s0, %s147
      %p149 = pneg %p35
      %p150 = pneg %p32
      %p151 = pneg %p56
      %p152 = pneg %p53
      %p153 = pneg %p77
      %p154 = pneg %p74
      %p155 = pneg %p103
      %p156 = pneg %p100
      %s157 = smul.u32 2, %s14
      %p158 = scmp.lt.s32.totalorder %s157, 3
      %s159 = scalar_select %p158, %s157, 3
      %s160 = smul.addr %s159, 4
      %s161 = scalar_lea.vmem %s3, %s160
      %s162 = smul.u32 2, %s14
      %p163 = scmp.lt.s32.totalorder %s162, 3
      %s164 = scalar_select %p163, %s162, 3
      %s165 = smul.addr %s164, 4
      %s166 = scalar_lea.vmem %s0, %s165
      %s167 = smul.u32 2, %s14
      %s168 = smul.u32 2, %s14
      %p169 = scmp.lt.s32.totalorder %s168, 3
      %s170 = scalar_select %p169, %s168, 3
      %s171 = smul.addr %s170, 4
      %s172 = scalar_lea.vmem %s3, %s171
      %s173 = smul.u32 2, %s14
      %v174 = vld [vmem:[%s166] sm:$0xf]
      %v175 = vld [vmem:[%s166 + $0x4] sm:$0xf]
      %v176 = vunpack.c.l.bf16 %v174
      %v177 = vunpack.c.l.bf16 %v175
      %v178 = vld [vmem:[%s1] sm:$0x1]
      %v180 = vperm.slane %v178, 0
      %v182 = vmul.f32 %v176, %v180
      %v183 = vmul.f32 %v177, %v180
      %v184 = vld [vmem:[%s2] sm:$0x1]
      %v186 = vperm.slane %v184, 0
      %v188 = vadd.f32 %v182, %v186
      %v189 = vadd.f32 %v183, %v186
      %v190 = vmax.f32 %v188, 0.0
      %v191 = vmax.f32 %v189, 0.0
      %v192 = vpack.c.bf16 %v190, %v190
      %v193 = vpack.c.bf16 %v191, %v191
      %194 = vst [vmem:[%s172] sm:$0xf] %v192
      %195 = vst [vmem:[%s172 + $0x4] sm:$0xf] %v193
      %s196 = smul.u32 2, %s14
      %p197 = scmp.lt.s32.totalorder %s196, 3
      %s198 = scalar_select %p197, %s196, 3
      %s199 = smul.addr %s198, 4
      %s200 = scalar_lea.vmem %s3, %s199
      // Predicated region
      $region33: #{spectrogram_encoder.9} parent=31 // pred_check
        %p201 = pneg %p100
      $region34: #{spectrogram_encoder.9} parent=31 // pred_check_branch
        %203 = sbr.rel (%p201) target = $region36
      $region35: #{spectrogram_encoder.9} parent=31 // pred_region
        %s204 = smul.u32 2, %s14
      $region36: #{spectrogram_encoder.9} parent=31 // pred_fallthru
        _
    $region32: #{spectrogram_encoder.9} parent=5 // pred_fallthru
      _
    %p205 = scmp.le.s32.totalorder 2, %s9
    // Predicated region
    $region37: #{spectrogram_encoder.9} parent=5 // pred_check
      %p206 = pneg %p205
    $region38: #{spectrogram_encoder.9} parent=5 // pred_check_branch
      %208 = sbr.rel (%p206) target = $region40
    $region39: #{spectrogram_encoder.9} parent=5 // pred_region
      %s209 = ssub.s32 %s9, 2
      // Predicated region
      $region41: #{spectrogram_encoder.9} parent=39 // pred_check
        %p210 = pneg %p106
      $region42: #{spectrogram_encoder.9} parent=39 // pred_check_branch
        %212 = sbr.rel (%p210) target = $region44
      $region43: #{spectrogram_encoder.9} parent=39 // pred_region
        %s213 = smul.u32 2, %s15
        %p214 = scmp.lt.s32.totalorder %s213, 3
        %s215 = scalar_select %p214, %s213, 3
        %s216 = smul.addr %s215, 4
        %s217 = scalar_lea.vmem %s3, %s216
      $region44: #{spectrogram_encoder.9} parent=39 // pred_fallthru
        _
    $region40: #{spectrogram_encoder.9} parent=5 // pred_fallthru
      _
  $region6: #{spectrogram_encoder.9} parent=0 // loop_footer
    %s13 = sadd.s32 1, %s9
  $region7: #{spectrogram_encoder.9} parent=0 // loop_footer_branch
    %8 = sbr.rel target = $region3
  $region8: #{spectrogram_encoder.9} parent=0 // loop_exit
    _

// kernel: spectrogram_encoder.8
$region0: #{spectrogram_encoder.8}
  #allocation0 [shape = 'u32[]', space=smem, size = 0x4, offset = 0x4, fixed_abs, tag = 'smem constant byte address 0x4 - core index']
  #allocation1 [shape = 'u32[72,128]{1,0:T(1,128)}', space=vmem, size = 0x9000, scoped, tag = 'internal scratch']
  %s0 = inlined_call_operand.vmem [shape: bf16[32,576], index: 0, kind: input, shape index: {}]
  %s1 = inlined_call_operand.vmem [shape: bf16[576,128], index: 1, kind: input, shape index: {}]
  %s2 = inlined_call_operand.vmem [shape: bf16[32,128], index: 2, kind: output, shape index: {0}]
  %s3 = inlined_call_operand.vmem [shape: f32[16,128], index: 3, kind: output, shape index: {1}]
  %4 = xla_tuple %s2, %s3
  %s5 = sld [smem:[#allocation0]]
  $region49: #{spectrogram_encoder.8} parent=0
    _
  %s7 = ssub.s32 1, %s5
  %s8 = scalar_select 0, %s7, %s5
  loop: start=0, step=1, limit=4
  $region2: #{spectrogram_encoder.8} parent=0 // loop_pre_header
    _
  $region3: #{spectrogram_encoder.8} parent=0 // loop_header
    %s10 = sphi 0, %s14
    %p11 = scmp.ge.s32.totalorder %s10, 4
    %s20 = sphi 0, %s22
    %s23 = sphi 0, %s20
    %s24 = sphi 0, %s23
    %s40 = sphi 0, %s24
    %s44 = sphi 0, %s44
    %s46 = sphi 0, %s44
    %s47 = sphi 0, %s46
    %s61 = sphi 0, %s47
    %s67 = sphi 0, %s69
    %s70 = sphi 0, %s67
    %s71 = sphi 0, %s70
    %s87 = sphi 0, %s71
    %s93 = sphi 0, %s95
    %s96 = sphi 0, %s93
    %s97 = sphi 0, %s96
    %s113 = sphi 0, %s97
  $region4: #{spectrogram_encoder.8} parent=0 // loop_header_branch
    %13 = sbr.rel (%p11) target = $region8
  $region5: #{spectrogram_encoder.8} parent=0 // loop_body
    %s15 = ssub.s32 %s10, 1
    %s16 = ssub.s32 %s10, 2
    %s17 = sadd.s32 %s10, 1
    %s18 = ssub.s32 %s10, %s17
    %p19 = scmp.eq.s32.totalorder %s18, 0
    %s21 = sadd.s32 %s20, 1
    %s22 = scalar_select %p19, %s20, %s21
    %p25 = pneg %p19
    %p26 = scmp.eq.s32.totalorder %s10, 1
    %p27 = por %p25, %p26
    %p28 = scmp.ne.s32.totalorder %s20, %s23
    %p29 = scmp.eq.s32.totalorder %s10, 0
    %p30 = por %p28, %p29
    %p31 = scmp.ne.s32.totalorder %s20, %s23
    %p32 = scmp.eq.s32.totalorder %s15, 1
    %p33 = por %p31, %p32
    %p34 = scmp.ne.s32.totalorder %s23, %s24
    %p35 = scmp.eq.s32.totalorder %s15, 0
    %p36 = por %p34, %p35
    %p37 = scmp.ne.s32.totalorder %s23, %s24
    %p38 = scmp.eq.s32.totalorder %s16, 1
    %p39 = por %p37, %p38
    %p41 = scmp.ne.s32.totalorder %s24, %s40
    %p42 = scmp.eq.s32.totalorder %s16, 0
    %p43 = por %p41, %p42
    %s45 = sadd.s32 %s44, 1
    %p48 = scmp.eq.s32.totalorder %s10, 1
    %p49 = scmp.ne.s32.totalorder %s44, %s46
    %p50 = scmp.eq.s32.totalorder %s10, 0
    %p51 = por %p49, %p50
    %p52 = scmp.ne.s32.totalorder %s44, %s46
    %p53 = scmp.eq.s32.totalorder %s15, 1
    %p54 = por %p52, %p53
    %p55 = scmp.ne.s32.totalorder %s46, %s47
    %p56 = scmp.eq.s32.totalorder %s15, 0
    %p57 = por %p55, %p56
    %p58 = scmp.ne.s32.totalorder %s46, %s47
    %p59 = scmp.eq.s32.totalorder %s16, 1
    %p60 = por %p58, %p59
    %p62 = scmp.ne.s32.totalorder %s47, %s61
    %p63 = scmp.eq.s32.totalorder %s16, 0
    %p64 = por %p62, %p63
    %s65 = ssub.s32 %s10, %s17
    %p66 = scmp.eq.s32.totalorder %s65, 0
    %s68 = sadd.s32 %s67, 1
    %s69 = scalar_select %p66, %s67, %s68
    %p72 = pneg %p66
    %p73 = scmp.eq.s32.totalorder %s10, 1
    %p74 = por %p72, %p73
    %p75 = scmp.ne.s32.totalorder %s67, %s70
    %p76 = scmp.eq.s32.totalorder %s10, 0
    %p77 = por %p75, %p76
    %p78 = scmp.ne.s32.totalorder %s67, %s70
    %p79 = scmp.eq.s32.totalorder %s15, 1
    %p80 = por %p78, %p79
    %p81 = scmp.ne.s32.totalorder %s70, %s71
    %p82 = scmp.eq.s32.totalorder %s15, 0
    %p83 = por %p81, %p82
    %p84 = scmp.ne.s32.totalorder %s70, %s71
    %p85 = scmp.eq.s32.totalorder %s16, 1
    %p86 = por %p84, %p85
    %p88 = scmp.ne.s32.totalorder %s71, %s87
    %p89 = scmp.eq.s32.totalorder %s16, 0
    %p90 = por %p88, %p89
    %s91 = ssub.s32 %s10, %s17
    %p92 = scmp.eq.s32.totalorder %s91, 0
    %s94 = sadd.s32 %s93, 1
    %s95 = scalar_select %p92, %s93, %s94
    %p98 = pneg %p92
    %p99 = scmp.eq.s32.totalorder %s10, 1
    %p100 = por %p98, %p99
    %p101 = scmp.ne.s32.totalorder %s93, %s96
    %p102 = scmp.eq.s32.totalorder %s10, 0
    %p103 = por %p101, %p102
    %p104 = scmp.ne.s32.totalorder %s93, %s96
    %p105 = scmp.eq.s32.totalorder %s15, 1
    %p106 = por %p104, %p105
    %p107 = scmp.ne.s32.totalorder %s96, %s97
    %p108 = scmp.eq.s32.totalorder %s15, 0
    %p109 = por %p107, %p108
    %p110 = scmp.ne.s32.totalorder %s96, %s97
    %p111 = scmp.eq.s32.totalorder %s16, 1
    %p112 = por %p110, %p111
    %p114 = scmp.ne.s32.totalorder %s97, %s113
    %p115 = scmp.eq.s32.totalorder %s16, 0
    %p116 = por %p114, %p115
    %p117 = scmp.le.s32.totalorder 1, %s10
    %p118 = scmp.lt.s32.totalorder %s10, 3
    %p119 = pnand %p117, %p118
    %p120 = pneg %p119
    // Predicated region
    $region9: #{spectrogram_encoder.8} parent=5 // pred_check
      _
    $region10: #{spectrogram_encoder.8} parent=5 // pred_check_branch
      %122 = sbr.rel (%p119) target = $region12
    $region11: #{spectrogram_encoder.8} parent=5 // pred_region
      %s123 = ssub.s32 %s10, 1
      // Predicated region
      $region13: #{spectrogram_encoder.8} parent=11 // pred_check
        %p124 = pneg %p57
      $region14: #{spectrogram_encoder.8} parent=11 // pred_check_branch
        %126 = sbr.rel (%p124) target = $region16
      $region15: #{spectrogram_encoder.8} parent=11 // pred_region
        _
      $region16: #{spectrogram_encoder.8} parent=11 // pred_fallthru
        _
    $region12: #{spectrogram_encoder.8} parent=5 // pred_fallthru
      _
    %p127 = scmp.lt.s32.totalorder %s10, 2
    // Predicated region
    $region17: #{spectrogram_encoder.8} parent=5 // pred_check
      %p128 = pneg %p127
    $region18: #{spectrogram_encoder.8} parent=5 // pred_check_branch
      %130 = sbr.rel (%p128) target = $region20
    $region19: #{spectrogram_encoder.8} parent=5 // pred_region
      // Predicated region
      $region21: #{spectrogram_encoder.8} parent=19 // pred_check
        %p131 = pneg %p30
      $region22: #{spectrogram_encoder.8} parent=19 // pred_check_branch
        %133 = sbr.rel (%p131) target = $region24
      $region23: #{spectrogram_encoder.8} parent=19 // pred_region
        %s134 = smul.u32 2, %s10
        %p135 = scmp.lt.s32.totalorder %s134, 3
        %s136 = scalar_select %p135, %s134, 3
        %s137 = smul.addr %s136, 5
        %s138 = smul.addr %s137, 4
        %s139 = scalar_lea.vmem %s0, %s138
        %s140 = smul.u32 2, %s10
      $region24: #{spectrogram_encoder.8} parent=19 // pred_fallthru
        _
    $region20: #{spectrogram_encoder.8} parent=5 // pred_fallthru
      _
    %p141 = scmp.le.s32.totalorder 1, %s10
    %p142 = scmp.lt.s32.totalorder %s10, 3
    %p143 = pnand %p141, %p142
    %p144 = pneg %p143
    // Predicated region
    $region25: #{spectrogram_encoder.8} parent=5 // pred_check
      _
    $region26: #{spectrogram_encoder.8} parent=5 // pred_check_branch
      %146 = sbr.rel (%p143) target = $region28
    $region27: #{spectrogram_encoder.8} parent=5 // pred_region
      %s147 = ssub.s32 %s10, 1
      %s148 = smul.u32 2, %s15
      %p149 = scmp.lt.s32.totalorder %s148, 3
      %s150 = scalar_select %p149, %s148, 3
      %s151 = smul.addr %s150, 5
      %s152 = smul.addr %s151, 4
      %s153 = scalar_lea.vmem %s0, %s152
      %p154 = pneg %p36
      %p155 = pneg %p33
      %p156 = pneg %p57
      %p157 = pneg %p54
      %p158 = pneg %p83
      %p159 = pneg %p80
      %s160 = smul.u32 2, %s15
      %p161 = scmp.lt.s32.totalorder %s160, 3
      %s162 = scalar_select %p161, %s160, 3
      %s163 = smul.addr %s162, 4
      %s164 = scalar_lea.vmem %s2, %s163
      %p165 = pneg %p109
      %p166 = pneg %p106
      %p167 = scmp.lt.s32.totalorder %s15, 1
      %s168 = scalar_select %p167, %s15, 1
      %s169 = smul.addr %s168, 8
      %s170 = scalar_lea.vmem %s3, %s169
      %s171 = smul.u32 2, %s15
      %p172 = scmp.lt.s32.totalorder %s171, 3
      %s173 = scalar_select %p172, %s171, 3
      %s174 = smul.addr %s173, 5
      %s175 = smul.addr %s174, 4
      %s176 = scalar_lea.vmem %s0, %s175
      %s177 = smul.u32 2, %s15
      %s178 = smul.u32 2, %s15
      %p179 = scmp.lt.s32.totalorder %s178, 3
      %s180 = scalar_select %p179, %s178, 3
      %s181 = smul.addr %s180, 4
      %s182 = scalar_lea.vmem %s2, %s181
      %s183 = smul.u32 2, %s15
      %p184 = scmp.lt.s32.totalorder %s15, 1
      %s185 = scalar_select %p184, %s15, 1
      %s186 = smul.addr %s185, 8
      %s187 = scalar_lea.vmem %s3, %s186
      %v189 = vld [vmem:[%s1] sm:$0xf]
      %v190 = vld [vmem:[%s1 + $0x4] sm:$0xf]
      %v191 = vld [vmem:[%s1 + $0x8] sm:$0xf]
      %v192 = vld [vmem:[%s1 + $0xc] sm:$0xf]
      %v193 = vld [vmem:[%s1 + $0x10] sm:$0xf]
      %v194 = vld [vmem:[%s1 + $0x14] sm:$0xf]
      %v195 = vld [vmem:[%s1 + $0x18] sm:$0xf]
      %v196 = vld [vmem:[%s1 + $0x1c] sm:$0xf]
      %v197 = vld [vmem:[%s1 + $0x20] sm:$0xf]
      %v198 = vld [vmem:[%s1 + $0x24] sm:$0xf]
      %v199 = vld [vmem:[%s1 + $0x28] sm:$0xf]
      %v200 = vld [vmem:[%s1 + $0x2c] sm:$0xf]
      %v201 = vld [vmem:[%s1 + $0x30] sm:$0xf]
      %v202 = vld [vmem:[%s1 + $0x34] sm:$0xf]
      %v203 = vld [vmem:[%s1 + $0x38] sm:$0xf]
      %v204 = vld [vmem:[%s1 + $0x3c] sm:$0xf]
      %v205 = vld [vmem:[%s1 + $0x40] sm:$0xf]
      %v206 = vld [vmem:[%s1 + $0x44] sm:$0xf]
      %v207 = vld [vmem:[%s1 + $0x48] sm:$0xf]
      %v208 = vld [vmem:[%s1 + $0x4c] sm:$0xf]
      %v209 = vld [vmem:[%s1 + $0x50] sm:$0xf]
      %v210 = vld [vmem:[%s1 + $0x54] sm:$0xf]
      %v211 = vld [vmem:[%s1 + $0x58] sm:$0xf]
      %v212 = vld [vmem:[%s1 + $0x5c] sm:$0xf]
      %v213 = vld [vmem:[%s1 + $0x60] sm:$0xf]
      %v214 = vld [vmem:[%s1 + $0x64] sm:$0xf]
      %v215 = vld [vmem:[%s1 + $0x68] sm:$0xf]
      %v216 = vld [vmem:[%s1 + $0x6c] sm:$0xf]
      %v217 = vld [vmem:[%s1 + $0x70] sm:$0xf]
      %v218 = vld [vmem:[%s1 + $0x74] sm:$0xf]
      %v219 = vld [vmem:[%s1 + $0x78] sm:$0xf]
      %v220 = vld [vmem:[%s1 + $0x7c] sm:$0xf]
      %v221 = vld [vmem:[%s1 + $0x80] sm:$0xf]
      %v222 = vld [vmem:[%s1 + $0x84] sm:$0xf]
      %v223 = vld [vmem:[%s1 + $0x88] sm:$0xf]
      %v224 = vld [vmem:[%s1 + $0x8c] sm:$0xf]
      %v225 = vld [vmem:[%s1 + $0x90] sm:$0xf]
      %v226 = vld [vmem:[%s1 + $0x94] sm:$0xf]
      %v227 = vld [vmem:[%s1 + $0x98] sm:$0xf]
      %v228 = vld [vmem:[%s1 + $0x9c] sm:$0xf]
      %v229 = vld [vmem:[%s1 + $0xa0] sm:$0xf]
      %v230 = vld [vmem:[%s1 + $0xa4] sm:$0xf]
      %v231 = vld [vmem:[%s1 + $0xa8] sm:$0xf]
      %v232 = vld [vmem:[%s1 + $0xac] sm:$0xf]
      %v233 = vld [vmem:[%s1 + $0xb0] sm:$0xf]
      %v234 = vld [vmem:[%s1 + $0xb4] sm:$0xf]
      %v235 = vld [vmem:[%s1 + $0xb8] sm:$0xf]
      %v236 = vld [vmem:[%s1 + $0xbc] sm:$0xf]
      %v237 = vld [vmem:[%s1 + $0xc0] sm:$0xf]
      %v238 = vld [vmem:[%s1 + $0xc4] sm:$0xf]
      %v239 = vld [vmem:[%s1 + $0xc8] sm:$0xf]
      %v240 = vld [vmem:[%s1 + $0xcc] sm:$0xf]
      %v241 = vld [vmem:[%s1 + $0xd0] sm:$0xf]
      %v242 = vld [vmem:[%s1 + $0xd4] sm:$0xf]
      %v243 = vld [vmem:[%s1 + $0xd8] sm:$0xf]
      %v244 = vld [vmem:[%s1 + $0xdc] sm:$0xf]
      %v245 = vld [vmem:[%s1 + $0xe0] sm:$0xf]
      %v246 = vld [vmem:[%s1 + $0xe4] sm:$0xf]
      %v247 = vld [vmem:[%s1 + $0xe8] sm:$0xf]
      %v248 = vld [vmem:[%s1 + $0xec] sm:$0xf]
      %v249 = vld [vmem:[%s1 + $0xf0] sm:$0xf]
      %v250 = vld [vmem:[%s1 + $0xf4] sm:$0xf]
      %v251 = vld [vmem:[%s1 + $0xf8] sm:$0xf]
      %v252 = vld [vmem:[%s1 + $0xfc] sm:$0xf]
      %v253 = vld [vmem:[%s1 + $0x100] sm:$0xf]
      %v254 = vld [vmem:[%s1 + $0x104] sm:$0xf]
      %v255 = vld [vmem:[%s1 + $0x108] sm:$0xf]
      %v256 = vld [vmem:[%s1 + $0x10c] sm:$0xf]
      %v257 = vld [vmem:[%s1 + $0x110] sm:$0xf]
      %v258 = vld [vmem:[%s1 + $0x114] sm:$0xf]
      %v259 = vld [vmem:[%s1 + $0x118] sm:$0xf]
      %v260 = vld [vmem:[%s1 + $0x11c] sm:$0xf]
      %s261 = smul.u32 0, 5
      %s262 = smul.addr %s261, 4
      %s263 = scalar_lea.vmem %s176, %s262
      %v264 = vld [vmem:[%s263] sm:$0xff]
      %v265 = vld [vmem:[%s263 + $0x8] sm:$0xff]
      %v266 = vld [vmem:[%s263 + $0x10] sm:$0xf]
      %v267 = vld [vmem:[%s263 + $0x14] sm:$0xff]
      %v268 = vld [vmem:[%s263 + $0x1c] sm:$0xff]
      %v269 = vld [vmem:[%s263 + $0x24] sm:$0xf]
      %v276 = vunpack.c.l.b16 %v264
      %v277 = vunpack.c.h.b16 %v264
      %v278 = vunpack.c.l.b16 %v265
      %v279 = vunpack.c.h.b16 %v265
      %v280 = vunpack.c.l.b16 %v266
      %v281 = vunpack.c.l.b16 %v267
      %v282 = vunpack.c.h.b16 %v267
      %v283 = vunpack.c.l.b16 %v268
      %v284 = vunpack.c.h.b16 %v268
      %v285 = vunpack.c.l.b16 %v269
      %v286 = vpack.c.b16 %v281, %v276
      %v287 = vpack.c.b16 %v282, %v277
      %v288 = vpack.c.b16 %v283, %v278
      %v289 = vpack.c.b16 %v284, %v279
      %v290 = vpack.c.b16 %v285, %v280
      %v367 = vunpack.c.l.b16 %v189
      %v368 = vunpack.c.l.b16 %v190
      %v369 = vunpack.c.l.b16 %v191
      %v370 = vunpack.c.l.b16 %v192
      %v371 = vunpack.c.l.b16 %v193
      %v372 = vunpack.c.l.b16 %v194
      %v373 = vunpack.c.l.b16 %v195
      %v374 = vunpack.c.l.b16 %v196
      %v375 = vunpack.c.l.b16 %v197
      %v376 = vunpack.c.l.b16 %v198
      %v377 = vunpack.c.l.b16 %v199
      %v378 = vunpack.c.l.b16 %v200
      %v379 = vunpack.c.l.b16 %v201
      %v380 = vunpack.c.l.b16 %v202
      %v381 = vunpack.c.l.b16 %v203
      %v382 = vunpack.c.l.b16 %v204
      %v383 = vunpack.c.l.b16 %v205
      %v384 = vunpack.c.l.b16 %v206
      %v385 = vunpack.c.l.b16 %v207
      %v386 = vunpack.c.l.b16 %v208
      %v387 = vunpack.c.l.b16 %v209
      %v388 = vunpack.c.l.b16 %v210
      %v389 = vunpack.c.l.b16 %v211
      %v390 = vunpack.c.l.b16 %v212
      %v391 = vunpack.c.l.b16 %v213
      %v392 = vunpack.c.l.b16 %v214
      %v393 = vunpack.c.l.b16 %v215
      %v394 = vunpack.c.l.b16 %v216
      %v395 = vunpack.c.l.b16 %v217
      %v396 = vunpack.c.l.b16 %v218
      %v397 = vunpack.c.l.b16 %v219
      %v398 = vunpack.c.l.b16 %v220
      %v399 = vunpack.c.l.b16 %v221
      %v400 = vunpack.c.l.b16 %v222
      %v401 = vunpack.c.l.b16 %v223
      %v402 = vunpack.c.l.b16 %v224
      %v403 = vunpack.c.l.b16 %v225
      %v404 = vunpack.c.l.b16 %v226
      %v405 = vunpack.c.l.b16 %v227
      %v406 = vunpack.c.l.b16 %v228
      %v407 = vunpack.c.l.b16 %v229
      %v408 = vunpack.c.l.b16 %v230
      %v409 = vunpack.c.l.b16 %v231
      %v410 = vunpack.c.l.b16 %v232
      %v411 = vunpack.c.l.b16 %v233
      %v412 = vunpack.c.l.b16 %v234
      %v413 = vunpack.c.l.b16 %v235
      %v414 = vunpack.c.l.b16 %v236
      %v415 = vunpack.c.l.b16 %v237
      %v416 = vunpack.c.l.b16 %v238
      %v417 = vunpack.c.l.b16 %v239
      %v418 = vunpack.c.l.b16 %v240
      %v419 = vunpack.c.l.b16 %v241
      %v420 = vunpack.c.l.b16 %v242
      %v421 = vunpack.c.l.b16 %v243
      %v422 = vunpack.c.l.b16 %v244
      %v423 = vunpack.c.l.b16 %v245
      %v424 = vunpack.c.l.b16 %v246
      %v425 = vunpack.c.l.b16 %v247
      %v426 = vunpack.c.l.b16 %v248
      %v427 = vunpack.c.l.b16 %v249
      %v428 = vunpack.c.l.b16 %v250
      %v429 = vunpack.c.l.b16 %v251
      %v430 = vunpack.c.l.b16 %v252
      %v431 = vunpack.c.l.b16 %v253
      %v432 = vunpack.c.l.b16 %v254
      %v433 = vunpack.c.l.b16 %v255
      %v434 = vunpack.c.l.b16 %v256
      %v435 = vunpack.c.l.b16 %v257
      %v436 = vunpack.c.l.b16 %v258
      %v437 = vunpack.c.l.b16 %v259
      %v438 = vunpack.c.l.b16 %v260
      %v439 = vpack.c.b16 %v368, %v367
      %v440 = vpack.c.b16 %v370, %v369
      %v441 = vpack.c.b16 %v372, %v371
      %v442 = vpack.c.b16 %v374, %v373
      %v443 = vpack.c.b16 %v376, %v375
      %v444 = vpack.c.b16 %v378, %v377
      %v445 = vpack.c.b16 %v380, %v379
      %v446 = vpack.c.b16 %v382, %v381
      %v447 = vpack.c.b16 %v384, %v383
      %v448 = vpack.c.b16 %v386, %v385
      %v449 = vpack.c.b16 %v388, %v387
      %v450 = vpack.c.b16 %v390, %v389
      %v451 = vpack.c.b16 %v392, %v391
      %v452 = vpack.c.b16 %v394, %v393
      %v453 = vpack.c.b16 %v396, %v395
      %v454 = vpack.c.b16 %v398, %v397
      %v455 = vpack.c.b16 %v400, %v399
      %v456 = vpack.c.b16 %v402, %v401
      %v457 = vpack.c.b16 %v404, %v403
      %v458 = vpack.c.b16 %v406, %v405
      %v459 = vpack.c.b16 %v408, %v407
      %v460 = vpack.c.b16 %v410, %v409
      %v461 = vpack.c.b16 %v412, %v411
      %v462 = vpack.c.b16 %v414, %v413
      %v463 = vpack.c.b16 %v416, %v415
      %v464 = vpack.c.b16 %v418, %v417
      %v465 = vpack.c.b16 %v420, %v419
      %v466 = vpack.c.b16 %v422, %v421
      %v467 = vpack.c.b16 %v424, %v423
      %v468 = vpack.c.b16 %v426, %v425
      %v469 = vpack.c.b16 %v428, %v427
      %v470 = vpack.c.b16 %v430, %v429
      %v471 = vpack.c.b16 %v432, %v431
      %v472 = vpack.c.b16 %v434, %v433
      %v473 = vpack.c.b16 %v436, %v435
      %v474 = vpack.c.b16 %v438, %v437
      %vm511 = vcmask 523264
      %v513 = vsel %vm511, %v290, 0
      %515 = vmatpush.bf16.msra.mxu0 %v446
      %516 = vmatpush.bf16.msra.mxu0 %v445
      %517 = vmatpush.bf16.msra.mxu0 %v444
      %518 = vmatpush.bf16.msra.mxu0 %v443
      %519 = vmatpush.bf16.msra.mxu0 %v442
      %520 = vmatpush.bf16.msra.mxu0 %v441
      %521 = vmatpush.bf16.msra.mxu0 %v440
      %522 = vmatpush.bf16.msra.mxu0 %v439
      %523 = vmatmul.bf16.gmra.mxu0 %v286
      %v524 = vpop.f32.mrf.mxu0
      %v525 = vadd.f32 0.0, %v524
      %v526 = vpop.f32.mrf.mxu0
      %v527 = vadd.f32 0.0, %v526
      %528 = vdwg.mxu0
      %529 = vmatpush.bf16.msra.mxu0 %v454
      %530 = vmatpush.bf16.msra.mxu0 %v453
      %531 = vmatpush.bf16.msra.mxu0 %v452
      %532 = vmatpush.bf16.msra.mxu0 %v451
      %533 = vmatpush.bf16.msra.mxu0 %v450
      %534 = vmatpush.bf16.msra.mxu0 %v449
      %535 = vmatpush.bf16.msra.mxu0 %v448
      %536 = vmatpush.bf16.msra.mxu0 %v447
      %537 = vmatmul.bf16.gmra.mxu0 %v287
      %v538 = vpop.f32.mrf.mxu0
      %v539 = vadd.f32 %v525, %v538
      %v540 = vpop.f32.mrf.mxu0
      %v541 = vadd.f32 %v527, %v540
      %542 = vdwg.mxu0
      %543 = vmatpush.bf16.msra.mxu0 %v462
      %544 = vmatpush.bf16.msra.mxu0 %v461
      %545 = vmatpush.bf16.msra.mxu0 %v460
      %546 = vmatpush.bf16.msra.mxu0 %v459
      %547 = vmatpush.bf16.msra.mxu0 %v458
      %548 = vmatpush.bf16.msra.mxu0 %v457
      %549 = vmatpush.bf16.msra.mxu0 %v456
      %550 = vmatpush.bf16.msra.mxu0 %v455
      %551 = vmatmul.bf16.gmra.mxu0 %v288
      %v552 = vpop.f32.mrf.mxu0
      %v553 = vadd.f32 %v539, %v552
      %v554 = vpop.f32.mrf.mxu0
      %v555 = vadd.f32 %v541, %v554
      %556 = vdwg.mxu0
      %557 = vmatpush.bf16.msra.mxu0 %v470
      %558 = vmatpush.bf16.msra.mxu0 %v469
      %559 = vmatpush.bf16.msra.mxu0 %v468
      %560 = vmatpush.bf16.msra.mxu0 %v467
      %561 = vmatpush.bf16.msra.mxu0 %v466
      %562 = vmatpush.bf16.msra.mxu0 %v465
      %563 = vmatpush.bf16.msra.mxu0 %v464
      %564 = vmatpush.bf16.msra.mxu0 %v463
      %565 = vmatmul.bf16.gmra.mxu0 %v289
      %v566 = vpop.f32.mrf.mxu0
      %v567 = vadd.f32 %v553, %v566
      %v568 = vpop.f32.mrf.mxu0
      %v569 = vadd.f32 %v555, %v568
      %570 = vdwg.mxu0
      %571 = vmatpush.bf16.msra.mxu0 0
      %572 = vmatpush.bf16.msra.mxu0 0
      %573 = vmatpush.bf16.msra.mxu0 0
      %574 = vmatpush.bf16.msra.mxu0 0
      %575 = vmatpush.bf16.msra.mxu0 %v474
      %576 = vmatpush.bf16.msra.mxu0 %v473
      %577 = vmatpush.bf16.msra.mxu0 %v472
      %578 = vmatpush.bf16.msra.mxu0 %v471
      %579 = vmatmul.bf16.gmra.mxu0 %v513
      %v580 = vpop.f32.mrf.mxu0
      %v581 = vadd.f32 %v567, %v580
      %v582 = vpop.f32.mrf.mxu0
      %v583 = vadd.f32 %v569, %v582
      %584 = vdwg.mxu0
      %v585 = vpack.c.bf16 %v581, %v581
      %v586 = vpack.c.bf16 %v583, %v583
      %587 = vst [vmem:[%s182] sm:$0xf] %v585
      %588 = vst [vmem:[%s182 + $0x4] sm:$0xf] %v586
      %v589 = vadd.f32 %v581, %v583
      %v590 = vrot.slane %v589, 4
      %v591 = vadd.f32 %v589, %v590
      %v592 = vrot.slane %v591, 2
      %v593 = vadd.f32 %v591, %v592
      %v594 = vrot.slane %v593, 1
      %v595 = vadd.f32 %v593, %v594
      %v596 = vadd.f32 %v595, 0.0
      %v597 = vmul.f32 %v581, %v581
      %v598 = vmul.f32 %v583, %v583
      %v599 = vadd.f32 %v597, %v598
      %v600 = vrot.slane %v599, 4
      %v601 = vadd.f32 %v599, %v600
      %v602 = vrot.slane %v601, 2
      %v603 = vadd.f32 %v601, %v602
      %v604 = vrot.slane %v603, 1
      %v605 = vadd.f32 %v603, %v604
      %v606 = vadd.f32 %v605, 0.0
      %607 = vst [vmem:[%s187] sm:$0x1] %v596
      %608 = vst [vmem:[%s187 + $0x1] sm:$0x1] %v606
      %s609 = smul.u32 2, %s15
      %p610 = scmp.lt.s32.totalorder %s609, 3
      %s611 = scalar_select %p610, %s609, 3
      %s612 = smul.addr %s611, 4
      %s613 = scalar_lea.vmem %s2, %s612
      %p614 = scmp.lt.s32.totalorder %s15, 1
      %s615 = scalar_select %p614, %s15, 1
      %s616 = smul.addr %s615, 8
      %s617 = scalar_lea.vmem %s3, %s616
      // Predicated region
      $region29: #{spectrogram_encoder.8} parent=27 // pred_check
        %p618 = pneg %p80
      $region30: #{spectrogram_encoder.8} parent=27 // pred_check_branch
        %620 = sbr.rel (%p618) target = $region32
      $region31: #{spectrogram_encoder.8} parent=27 // pred_region
        %s621 = smul.u32 2, %s15
      $region32: #{spectrogram_encoder.8} parent=27 // pred_fallthru
        _
      // Predicated region
      $region33: #{spectrogram_encoder.8} parent=27 // pred_check
        %p622 = pneg %p106
      $region34: #{spectrogram_encoder.8} parent=27 // pred_check_branch
        %624 = sbr.rel (%p622) target = $region36
      $region35: #{spectrogram_encoder.8} parent=27 // pred_region
        _
      $region36: #{spectrogram_encoder.8} parent=27 // pred_fallthru
        _
    $region28: #{spectrogram_encoder.8} parent=5 // pred_fallthru
      _
    %p625 = scmp.le.s32.totalorder 2, %s10
    // Predicated region
    $region37: #{spectrogram_encoder.8} parent=5 // pred_check
      %p626 = pneg %p625
    $region38: #{spectrogram_encoder.8} parent=5 // pred_check_branch
      %628 = sbr.rel (%p626) target = $region40
    $region39: #{spectrogram_encoder.8} parent=5 // pred_region
      %s629 = ssub.s32 %s10, 2
      // Predicated region
      $region41: #{spectrogram_encoder.8} parent=39 // pred_check
        %p630 = pneg %p86
      $region42: #{spectrogram_encoder.8} parent=39 // pred_check_branch
        %632 = sbr.rel (%p630) target = $region44
      $region43: #{spectrogram_encoder.8} parent=39 // pred_region
        %s633 = smul.u32 2, %s16
        %p634 = scmp.lt.s32.totalorder %s633, 3
        %s635 = scalar_select %p634, %s633, 3
        %s636 = smul.addr %s635, 4
        %s637 = scalar_lea.vmem %s2, %s636
      $region44: #{spectrogram_encoder.8} parent=39 // pred_fallthru
        _
      // Predicated region
      $region45: #{spectrogram_encoder.8} parent=39 // pred_check
        %p638 = pneg %p112
      $region46: #{spectrogram_encoder.8} parent=39 // pred_check_branch
        %640 = sbr.rel (%p638) target = $region48
      $region47: #{spectrogram_encoder.8} parent=39 // pred_region
        %p641 = scmp.lt.s32.totalorder %s16, 1
        %s642 = scalar_select %p641, %s16, 1
        %s643 = smul.addr %s642, 8
        %s644 = scalar_lea.vmem %s3, %s643
      $region48: #{spectrogram_encoder.8} parent=39 // pred_fallthru
        _
    $region40: #{spectrogram_encoder.8} parent=5 // pred_fallthru
      _
  $region6: #{spectrogram_encoder.8} parent=0 // loop_footer
    %s14 = sadd.s32 1, %s10
  $region7: #{spectrogram_encoder.8} parent=0 // loop_footer_branch
    %9 = sbr.rel target = $region3
  $region8: #{spectrogram_encoder.8} parent=0 // loop_exit
    _

// kernel: spectrogram_encoder.11
$region0: #{spectrogram_encoder.11}
  #allocation0 [shape = 'u32[]', space=smem, size = 0x4, offset = 0x4, fixed_abs, tag = 'smem constant byte address 0x4 - core index']
  #allocation1 [shape = 'u32[72,128]{1,0:T(1,128)}', space=vmem, size = 0x9000, scoped, tag = 'internal scratch']
  %s0 = inlined_call_operand.vmem [shape: bf16[16,8], index: 0, kind: input, shape index: {}]
  %s1 = inlined_call_operand.vmem [shape: f32[1,8], index: 1, kind: input, shape index: {}]
  %s2 = inlined_call_operand.vmem [shape: f32[1,8], index: 2, kind: input, shape index: {}]
  %s3 = inlined_call_operand.vmem [shape: f32[16,8], index: 3, kind: output, shape index: {}]
  %s4 = sld [smem:[#allocation0]]
  $region22: #{spectrogram_encoder.11} parent=0
    _
  %s6 = ssub.s32 1, %s4
  %s7 = scalar_select 0, %s6, %s4
  // Predicated region
  $region2: #{spectrogram_encoder.11} parent=0 // pred_check
    _
  $region3: #{spectrogram_encoder.11} parent=0 // pred_check_branch
    %9 = sbr.rel (0) target = $region5
  $region4: #{spectrogram_encoder.11} parent=0 // pred_region
    _
  $region5: #{spectrogram_encoder.11} parent=0 // pred_fallthru
    _
  // Predicated region
  $region6: #{spectrogram_encoder.11} parent=0 // pred_check
    _
  $region7: #{spectrogram_encoder.11} parent=0 // pred_check_branch
    %11 = sbr.rel (0) target = $region9
  $region8: #{spectrogram_encoder.11} parent=0 // pred_region
    _
  $region9: #{spectrogram_encoder.11} parent=0 // pred_fallthru
    _
  // Predicated region
  $region10: #{spectrogram_encoder.11} parent=0 // pred_check
    _
  $region11: #{spectrogram_encoder.11} parent=0 // pred_check_branch
    %13 = sbr.rel (0) target = $region13
  $region12: #{spectrogram_encoder.11} parent=0 // pred_region
    _
  $region13: #{spectrogram_encoder.11} parent=0 // pred_fallthru
    _
  %v14 = vld [vmem:[%s0] sm:$0xf]
  %v15 = vld [vmem:[%s0 + $0x4] sm:$0xf]
  %v16 = vunpack.c.l.bf16 %v14
  %v17 = vunpack.c.l.bf16 %v15
  %v18 = vld [vmem:[%s1] sm:$0x1]
  %v20 = vperm.slane %v18, 0
  %v22 = vmul.f32 %v16, %v20
  %v23 = vmul.f32 %v17, %v20
  %v24 = vld [vmem:[%s2] sm:$0x1]
  %v26 = vperm.slane %v24, 0
  %v28 = vadd.f32 %v22, %v26
  %v29 = vadd.f32 %v23, %v26
  %vm30 = vcmask 64512
  %31 = vst.msk [vmem:[%s3] sm:$0xff] %vm30, %v28
  %32 = vst.msk [vmem:[%s3 + $0x8] sm:$0xff] %vm30, %v29
  // Predicated region
  $region14: #{spectrogram_encoder.11} parent=0 // pred_check
    _
  $region15: #{spectrogram_encoder.11} parent=0 // pred_check_branch
    %34 = sbr.rel (0) target = $region17
  $region16: #{spectrogram_encoder.11} parent=0 // pred_region
    _
  $region17: #{spectrogram_encoder.11} parent=0 // pred_fallthru
    _
  // Predicated region
  $region18: #{spectrogram_encoder.11} parent=0 // pred_check
    _
  $region19: #{spectrogram_encoder.11} parent=0 // pred_check_branch
    %36 = sbr.rel (0) target = $region21
  $region20: #{spectrogram_encoder.11} parent=0 // pred_region
    _
  $region21: #{spectrogram_encoder.11} parent=0 // pred_fallthru
    _

// kernel: spectrogram_encoder.10
$region0: #{spectrogram_encoder.10}
  #allocation0 [shape = 'u32[]', space=smem, size = 0x4, offset = 0x4, fixed_abs, tag = 'smem constant byte address 0x4 - core index']
  #allocation1 [shape = 'u32[72,128]{1,0:T(1,128)}', space=vmem, size = 0x9000, scoped, tag = 'internal scratch']
  %s0 = inlined_call_operand.vmem [shape: bf16[16,1152], index: 0, kind: input, shape index: {}]
  %s1 = inlined_call_operand.vmem [shape: bf16[1152,8], index: 1, kind: input, shape index: {}]
  %s2 = inlined_call_operand.vmem [shape: bf16[16,8], index: 2, kind: output, shape index: {0}]
  %s3 = inlined_call_operand.vmem [shape: f32[8,8], index: 3, kind: output, shape index: {1}]
  %4 = xla_tuple %s2, %s3
  %s5 = sld [smem:[#allocation0]]
  $region26: #{spectrogram_encoder.10} parent=0
    _
  %s7 = ssub.s32 1, %s5
  %s8 = scalar_select 0, %s7, %s5
  // Predicated region
  $region2: #{spectrogram_encoder.10} parent=0 // pred_check
    _
  $region3: #{spectrogram_encoder.10} parent=0 // pred_check_branch
    %10 = sbr.rel (0) target = $region5
  $region4: #{spectrogram_encoder.10} parent=0 // pred_region
    _
  $region5: #{spectrogram_encoder.10} parent=0 // pred_fallthru
    _
  // Predicated region
  $region6: #{spectrogram_encoder.10} parent=0 // pred_check
    _
  $region7: #{spectrogram_encoder.10} parent=0 // pred_check_branch
    %12 = sbr.rel (0) target = $region9
  $region8: #{spectrogram_encoder.10} parent=0 // pred_region
    _
  $region9: #{spectrogram_encoder.10} parent=0 // pred_fallthru
    _
  %v13 = vld [vmem:[%s1] sm:$0xf]
  %v14 = vld [vmem:[%s1 + $0x4] sm:$0xf]
  %v15 = vld [vmem:[%s1 + $0x8] sm:$0xf]
  %v16 = vld [vmem:[%s1 + $0xc] sm:$0xf]
  %v17 = vld [vmem:[%s1 + $0x10] sm:$0xf]
  %v18 = vld [vmem:[%s1 + $0x14] sm:$0xf]
  %v19 = vld [vmem:[%s1 + $0x18] sm:$0xf]
  %v20 = vld [vmem:[%s1 + $0x1c] sm:$0xf]
  %v21 = vld [vmem:[%s1 + $0x20] sm:$0xf]
  %v22 = vld [vmem:[%s1 + $0x24] sm:$0xf]
  %v23 = vld [vmem:[%s1 + $0x28] sm:$0xf]
  %v24 = vld [vmem:[%s1 + $0x2c] sm:$0xf]
  %v25 = vld [vmem:[%s1 + $0x30] sm:$0xf]
  %v26 = vld [vmem:[%s1 + $0x34] sm:$0xf]
  %v27 = vld [vmem:[%s1 + $0x38] sm:$0xf]
  %v28 = vld [vmem:[%s1 + $0x3c] sm:$0xf]
  %v29 = vld [vmem:[%s1 + $0x40] sm:$0xf]
  %v30 = vld [vmem:[%s1 + $0x44] sm:$0xf]
  %v31 = vld [vmem:[%s1 + $0x48] sm:$0xf]
  %v32 = vld [vmem:[%s1 + $0x4c] sm:$0xf]
  %v33 = vld [vmem:[%s1 + $0x50] sm:$0xf]
  %v34 = vld [vmem:[%s1 + $0x54] sm:$0xf]
  %v35 = vld [vmem:[%s1 + $0x58] sm:$0xf]
  %v36 = vld [vmem:[%s1 + $0x5c] sm:$0xf]
  %v37 = vld [vmem:[%s1 + $0x60] sm:$0xf]
  %v38 = vld [vmem:[%s1 + $0x64] sm:$0xf]
  %v39 = vld [vmem:[%s1 + $0x68] sm:$0xf]
  %v40 = vld [vmem:[%s1 + $0x6c] sm:$0xf]
  %v41 = vld [vmem:[%s1 + $0x70] sm:$0xf]
  %v42 = vld [vmem:[%s1 + $0x74] sm:$0xf]
  %v43 = vld [vmem:[%s1 + $0x78] sm:$0xf]
  %v44 = vld [vmem:[%s1 + $0x7c] sm:$0xf]
  %v45 = vld [vmem:[%s1 + $0x80] sm:$0xf]
  %v46 = vld [vmem:[%s1 + $0x84] sm:$0xf]
  %v47 = vld [vmem:[%s1 + $0x88] sm:$0xf]
  %v48 = vld [vmem:[%s1 + $0x8c] sm:$0xf]
  %v49 = vld [vmem:[%s1 + $0x90] sm:$0xf]
  %v50 = vld [vmem:[%s1 + $0x94] sm:$0xf]
  %v51 = vld [vmem:[%s1 + $0x98] sm:$0xf]
  %v52 = vld [vmem:[%s1 + $0x9c] sm:$0xf]
  %v53 = vld [vmem:[%s1 + $0xa0] sm:$0xf]
  %v54 = vld [vmem:[%s1 + $0xa4] sm:$0xf]
  %v55 = vld [vmem:[%s1 + $0xa8] sm:$0xf]
  %v56 = vld [vmem:[%s1 + $0xac] sm:$0xf]
  %v57 = vld [vmem:[%s1 + $0xb0] sm:$0xf]
  %v58 = vld [vmem:[%s1 + $0xb4] sm:$0xf]
  %v59 = vld [vmem:[%s1 + $0xb8] sm:$0xf]
  %v60 = vld [vmem:[%s1 + $0xbc] sm:$0xf]
  %v61 = vld [vmem:[%s1 + $0xc0] sm:$0xf]
  %v62 = vld [vmem:[%s1 + $0xc4] sm:$0xf]
  %v63 = vld [vmem:[%s1 + $0xc8] sm:$0xf]
  %v64 = vld [vmem:[%s1 + $0xcc] sm:$0xf]
  %v65 = vld [vmem:[%s1 + $0xd0] sm:$0xf]
  %v66 = vld [vmem:[%s1 + $0xd4] sm:$0xf]
  %v67 = vld [vmem:[%s1 + $0xd8] sm:$0xf]
  %v68 = vld [vmem:[%s1 + $0xdc] sm:$0xf]
  %v69 = vld [vmem:[%s1 + $0xe0] sm:$0xf]
  %v70 = vld [vmem:[%s1 + $0xe4] sm:$0xf]
  %v71 = vld [vmem:[%s1 + $0xe8] sm:$0xf]
  %v72 = vld [vmem:[%s1 + $0xec] sm:$0xf]
  %v73 = vld [vmem:[%s1 + $0xf0] sm:$0xf]
  %v74 = vld [vmem:[%s1 + $0xf4] sm:$0xf]
  %v75 = vld [vmem:[%s1 + $0xf8] sm:$0xf]
  %v76 = vld [vmem:[%s1 + $0xfc] sm:$0xf]
  %v77 = vld [vmem:[%s1 + $0x100] sm:$0xf]
  %v78 = vld [vmem:[%s1 + $0x104] sm:$0xf]
  %v79 = vld [vmem:[%s1 + $0x108] sm:$0xf]
  %v80 = vld [vmem:[%s1 + $0x10c] sm:$0xf]
  %v81 = vld [vmem:[%s1 + $0x110] sm:$0xf]
  %v82 = vld [vmem:[%s1 + $0x114] sm:$0xf]
  %v83 = vld [vmem:[%s1 + $0x118] sm:$0xf]
  %v84 = vld [vmem:[%s1 + $0x11c] sm:$0xf]
  %v85 = vld [vmem:[%s1 + $0x120] sm:$0xf]
  %v86 = vld [vmem:[%s1 + $0x124] sm:$0xf]
  %v87 = vld [vmem:[%s1 + $0x128] sm:$0xf]
  %v88 = vld [vmem:[%s1 + $0x12c] sm:$0xf]
  %v89 = vld [vmem:[%s1 + $0x130] sm:$0xf]
  %v90 = vld [vmem:[%s1 + $0x134] sm:$0xf]
  %v91 = vld [vmem:[%s1 + $0x138] sm:$0xf]
  %v92 = vld [vmem:[%s1 + $0x13c] sm:$0xf]
  %v93 = vld [vmem:[%s1 + $0x140] sm:$0xf]
  %v94 = vld [vmem:[%s1 + $0x144] sm:$0xf]
  %v95 = vld [vmem:[%s1 + $0x148] sm:$0xf]
  %v96 = vld [vmem:[%s1 + $0x14c] sm:$0xf]
  %v97 = vld [vmem:[%s1 + $0x150] sm:$0xf]
  %v98 = vld [vmem:[%s1 + $0x154] sm:$0xf]
  %v99 = vld [vmem:[%s1 + $0x158] sm:$0xf]
  %v100 = vld [vmem:[%s1 + $0x15c] sm:$0xf]
  %v101 = vld [vmem:[%s1 + $0x160] sm:$0xf]
  %v102 = vld [vmem:[%s1 + $0x164] sm:$0xf]
  %v103 = vld [vmem:[%s1 + $0x168] sm:$0xf]
  %v104 = vld [vmem:[%s1 + $0x16c] sm:$0xf]
  %v105 = vld [vmem:[%s1 + $0x170] sm:$0xf]
  %v106 = vld [vmem:[%s1 + $0x174] sm:$0xf]
  %v107 = vld [vmem:[%s1 + $0x178] sm:$0xf]
  %v108 = vld [vmem:[%s1 + $0x17c] sm:$0xf]
  %v109 = vld [vmem:[%s1 + $0x180] sm:$0xf]
  %v110 = vld [vmem:[%s1 + $0x184] sm:$0xf]
  %v111 = vld [vmem:[%s1 + $0x188] sm:$0xf]
  %v112 = vld [vmem:[%s1 + $0x18c] sm:$0xf]
  %v113 = vld [vmem:[%s1 + $0x190] sm:$0xf]
  %v114 = vld [vmem:[%s1 + $0x194] sm:$0xf]
  %v115 = vld [vmem:[%s1 + $0x198] sm:$0xf]
  %v116 = vld [vmem:[%s1 + $0x19c] sm:$0xf]
  %v117 = vld [vmem:[%s1 + $0x1a0] sm:$0xf]
  %v118 = vld [vmem:[%s1 + $0x1a4] sm:$0xf]
  %v119 = vld [vmem:[%s1 + $0x1a8] sm:$0xf]
  %v120 = vld [vmem:[%s1 + $0x1ac] sm:$0xf]
  %v121 = vld [vmem:[%s1 + $0x1b0] sm:$0xf]
  %v122 = vld [vmem:[%s1 + $0x1b4] sm:$0xf]
  %v123 = vld [vmem:[%s1 + $0x1b8] sm:$0xf]
  %v124 = vld [vmem:[%s1 + $0x1bc] sm:$0xf]
  %v125 = vld [vmem:[%s1 + $0x1c0] sm:$0xf]
  %v126 = vld [vmem:[%s1 + $0x1c4] sm:$0xf]
  %v127 = vld [vmem:[%s1 + $0x1c8] sm:$0xf]
  %v128 = vld [vmem:[%s1 + $0x1cc] sm:$0xf]
  %v129 = vld [vmem:[%s1 + $0x1d0] sm:$0xf]
  %v130 = vld [vmem:[%s1 + $0x1d4] sm:$0xf]
  %v131 = vld [vmem:[%s1 + $0x1d8] sm:$0xf]
  %v132 = vld [vmem:[%s1 + $0x1dc] sm:$0xf]
  %v133 = vld [vmem:[%s1 + $0x1e0] sm:$0xf]
  %v134 = vld [vmem:[%s1 + $0x1e4] sm:$0xf]
  %v135 = vld [vmem:[%s1 + $0x1e8] sm:$0xf]
  %v136 = vld [vmem:[%s1 + $0x1ec] sm:$0xf]
  %v137 = vld [vmem:[%s1 + $0x1f0] sm:$0xf]
  %v138 = vld [vmem:[%s1 + $0x1f4] sm:$0xf]
  %v139 = vld [vmem:[%s1 + $0x1f8] sm:$0xf]
  %v140 = vld [vmem:[%s1 + $0x1fc] sm:$0xf]
  %v141 = vld [vmem:[%s1 + $0x200] sm:$0xf]
  %v142 = vld [vmem:[%s1 + $0x204] sm:$0xf]
  %v143 = vld [vmem:[%s1 + $0x208] sm:$0xf]
  %v144 = vld [vmem:[%s1 + $0x20c] sm:$0xf]
  %v145 = vld [vmem:[%s1 + $0x210] sm:$0xf]
  %v146 = vld [vmem:[%s1 + $0x214] sm:$0xf]
  %v147 = vld [vmem:[%s1 + $0x218] sm:$0xf]
  %v148 = vld [vmem:[%s1 + $0x21c] sm:$0xf]
  %v149 = vld [vmem:[%s1 + $0x220] sm:$0xf]
  %v150 = vld [vmem:[%s1 + $0x224] sm:$0xf]
  %v151 = vld [vmem:[%s1 + $0x228] sm:$0xf]
  %v152 = vld [vmem:[%s1 + $0x22c] sm:$0xf]
  %v153 = vld [vmem:[%s1 + $0x230] sm:$0xf]
  %v154 = vld [vmem:[%s1 + $0x234] sm:$0xf]
  %v155 = vld [vmem:[%s1 + $0x238] sm:$0xf]
  %v156 = vld [vmem:[%s1 + $0x23c] sm:$0xf]
  %s157 = smul.u32 0, 9
  %s158 = smul.addr %s157, 4
  %s159 = scalar_lea.vmem %s0, %s158
  %v160 = vld [vmem:[%s159] sm:$0xff]
  %v161 = vld [vmem:[%s159 + $0x8] sm:$0xff]
  %v162 = vld [vmem:[%s159 + $0x10] sm:$0xff]
  %v163 = vld [vmem:[%s159 + $0x18] sm:$0xff]
  %v164 = vld [vmem:[%s159 + $0x20] sm:$0xf]
  %v165 = vld [vmem:[%s159 + $0x24] sm:$0xff]
  %v166 = vld [vmem:[%s159 + $0x2c] sm:$0xff]
  %v167 = vld [vmem:[%s159 + $0x34] sm:$0xff]
  %v168 = vld [vmem:[%s159 + $0x3c] sm:$0xff]
  %v169 = vld [vmem:[%s159 + $0x44] sm:$0xf]
  %v180 = vunpack.c.l.b16 %v160
  %v181 = vunpack.c.h.b16 %v160
  %v182 = vunpack.c.l.b16 %v161
  %v183 = vunpack.c.h.b16 %v161
  %v184 = vunpack.c.l.b16 %v162
  %v185 = vunpack.c.h.b16 %v162
  %v186 = vunpack.c.l.b16 %v163
  %v187 = vunpack.c.h.b16 %v163
  %v188 = vunpack.c.l.b16 %v164
  %v189 = vunpack.c.l.b16 %v165
  %v190 = vunpack.c.h.b16 %v165
  %v191 = vunpack.c.l.b16 %v166
  %v192 = vunpack.c.h.b16 %v166
  %v193 = vunpack.c.l.b16 %v167
  %v194 = vunpack.c.h.b16 %v167
  %v195 = vunpack.c.l.b16 %v168
  %v196 = vunpack.c.h.b16 %v168
  %v197 = vunpack.c.l.b16 %v169
  %v198 = vpack.c.b16 %v189, %v180
  %v199 = vpack.c.b16 %v190, %v181
  %v200 = vpack.c.b16 %v191, %v182
  %v201 = vpack.c.b16 %v192, %v183
  %v202 = vpack.c.b16 %v193, %v184
  %v203 = vpack.c.b16 %v194, %v185
  %v204 = vpack.c.b16 %v195, %v186
  %v205 = vpack.c.b16 %v196, %v187
  %v206 = vpack.c.b16 %v197, %v188
  %v360 = vunpack.c.l.b16 %v13
  %v361 = vunpack.c.l.b16 %v14
  %v362 = vunpack.c.l.b16 %v15
  %v363 = vunpack.c.l.b16 %v16
  %v364 = vunpack.c.l.b16 %v17
  %v365 = vunpack.c.l.b16 %v18
  %v366 = vunpack.c.l.b16 %v19
  %v367 = vunpack.c.l.b16 %v20
  %v368 = vunpack.c.l.b16 %v21
  %v369 = vunpack.c.l.b16 %v22
  %v370 = vunpack.c.l.b16 %v23
  %v371 = vunpack.c.l.b16 %v24
  %v372 = vunpack.c.l.b16 %v25
  %v373 = vunpack.c.l.b16 %v26
  %v374 = vunpack.c.l.b16 %v27
  %v375 = vunpack.c.l.b16 %v28
  %v376 = vunpack.c.l.b16 %v29
  %v377 = vunpack.c.l.b16 %v30
  %v378 = vunpack.c.l.b16 %v31
  %v379 = vunpack.c.l.b16 %v32
  %v380 = vunpack.c.l.b16 %v33
  %v381 = vunpack.c.l.b16 %v34
  %v382 = vunpack.c.l.b16 %v35
  %v383 = vunpack.c.l.b16 %v36
  %v384 = vunpack.c.l.b16 %v37
  %v385 = vunpack.c.l.b16 %v38
  %v386 = vunpack.c.l.b16 %v39
  %v387 = vunpack.c.l.b16 %v40
  %v388 = vunpack.c.l.b16 %v41
  %v389 = vunpack.c.l.b16 %v42
  %v390 = vunpack.c.l.b16 %v43
  %v391 = vunpack.c.l.b16 %v44
  %v392 = vunpack.c.l.b16 %v45
  %v393 = vunpack.c.l.b16 %v46
  %v394 = vunpack.c.l.b16 %v47
  %v395 = vunpack.c.l.b16 %v48
  %v396 = vunpack.c.l.b16 %v49
  %v397 = vunpack.c.l.b16 %v50
  %v398 = vunpack.c.l.b16 %v51
  %v399 = vunpack.c.l.b16 %v52
  %v400 = vunpack.c.l.b16 %v53
  %v401 = vunpack.c.l.b16 %v54
  %v402 = vunpack.c.l.b16 %v55
  %v403 = vunpack.c.l.b16 %v56
  %v404 = vunpack.c.l.b16 %v57
  %v405 = vunpack.c.l.b16 %v58
  %v406 = vunpack.c.l.b16 %v59
  %v407 = vunpack.c.l.b16 %v60
  %v408 = vunpack.c.l.b16 %v61
  %v409 = vunpack.c.l.b16 %v62
  %v410 = vunpack.c.l.b16 %v63
  %v411 = vunpack.c.l.b16 %v64
  %v412 = vunpack.c.l.b16 %v65
  %v413 = vunpack.c.l.b16 %v66
  %v414 = vunpack.c.l.b16 %v67
  %v415 = vunpack.c.l.b16 %v68
  %v416 = vunpack.c.l.b16 %v69
  %v417 = vunpack.c.l.b16 %v70
  %v418 = vunpack.c.l.b16 %v71
  %v419 = vunpack.c.l.b16 %v72
  %v420 = vunpack.c.l.b16 %v73
  %v421 = vunpack.c.l.b16 %v74
  %v422 = vunpack.c.l.b16 %v75
  %v423 = vunpack.c.l.b16 %v76
  %v424 = vunpack.c.l.b16 %v77
  %v425 = vunpack.c.l.b16 %v78
  %v426 = vunpack.c.l.b16 %v79
  %v427 = vunpack.c.l.b16 %v80
  %v428 = vunpack.c.l.b16 %v81
  %v429 = vunpack.c.l.b16 %v82
  %v430 = vunpack.c.l.b16 %v83
  %v431 = vunpack.c.l.b16 %v84
  %v432 = vunpack.c.l.b16 %v85
  %v433 = vunpack.c.l.b16 %v86
  %v434 = vunpack.c.l.b16 %v87
  %v435 = vunpack.c.l.b16 %v88
  %v436 = vunpack.c.l.b16 %v89
  %v437 = vunpack.c.l.b16 %v90
  %v438 = vunpack.c.l.b16 %v91
  %v439 = vunpack.c.l.b16 %v92
  %v440 = vunpack.c.l.b16 %v93
  %v441 = vunpack.c.l.b16 %v94
  %v442 = vunpack.c.l.b16 %v95
  %v443 = vunpack.c.l.b16 %v96
  %v444 = vunpack.c.l.b16 %v97
  %v445 = vunpack.c.l.b16 %v98
  %v446 = vunpack.c.l.b16 %v99
  %v447 = vunpack.c.l.b16 %v100
  %v448 = vunpack.c.l.b16 %v101
  %v449 = vunpack.c.l.b16 %v102
  %v450 = vunpack.c.l.b16 %v103
  %v451 = vunpack.c.l.b16 %v104
  %v452 = vunpack.c.l.b16 %v105
  %v453 = vunpack.c.l.b16 %v106
  %v454 = vunpack.c.l.b16 %v107
  %v455 = vunpack.c.l.b16 %v108
  %v456 = vunpack.c.l.b16 %v109
  %v457 = vunpack.c.l.b16 %v110
  %v458 = vunpack.c.l.b16 %v111
  %v459 = vunpack.c.l.b16 %v112
  %v460 = vunpack.c.l.b16 %v113
  %v461 = vunpack.c.l.b16 %v114
  %v462 = vunpack.c.l.b16 %v115
  %v463 = vunpack.c.l.b16 %v116
  %v464 = vunpack.c.l.b16 %v117
  %v465 = vunpack.c.l.b16 %v118
  %v466 = vunpack.c.l.b16 %v119
  %v467 = vunpack.c.l.b16 %v120
  %v468 = vunpack.c.l.b16 %v121
  %v469 = vunpack.c.l.b16 %v122
  %v470 = vunpack.c.l.b16 %v123
  %v471 = vunpack.c.l.b16 %v124
  %v472 = vunpack.c.l.b16 %v125
  %v473 = vunpack.c.l.b16 %v126
  %v474 = vunpack.c.l.b16 %v127
  %v475 = vunpack.c.l.b16 %v128
  %v476 = vunpack.c.l.b16 %v129
  %v477 = vunpack.c.l.b16 %v130
  %v478 = vunpack.c.l.b16 %v131
  %v479 = vunpack.c.l.b16 %v132
  %v480 = vunpack.c.l.b16 %v133
  %v481 = vunpack.c.l.b16 %v134
  %v482 = vunpack.c.l.b16 %v135
  %v483 = vunpack.c.l.b16 %v136
  %v484 = vunpack.c.l.b16 %v137
  %v485 = vunpack.c.l.b16 %v138
  %v486 = vunpack.c.l.b16 %v139
  %v487 = vunpack.c.l.b16 %v140
  %v488 = vunpack.c.l.b16 %v141
  %v489 = vunpack.c.l.b16 %v142
  %v490 = vunpack.c.l.b16 %v143
  %v491 = vunpack.c.l.b16 %v144
  %v492 = vunpack.c.l.b16 %v145
  %v493 = vunpack.c.l.b16 %v146
  %v494 = vunpack.c.l.b16 %v147
  %v495 = vunpack.c.l.b16 %v148
  %v496 = vunpack.c.l.b16 %v149
  %v497 = vunpack.c.l.b16 %v150
  %v498 = vunpack.c.l.b16 %v151
  %v499 = vunpack.c.l.b16 %v152
  %v500 = vunpack.c.l.b16 %v153
  %v501 = vunpack.c.l.b16 %v154
  %v502 = vunpack.c.l.b16 %v155
  %v503 = vunpack.c.l.b16 %v156
  %v504 = vpack.c.b16 %v361, %v360
  %v505 = vpack.c.b16 %v363, %v362
  %v506 = vpack.c.b16 %v365, %v364
  %v507 = vpack.c.b16 %v367, %v366
  %v508 = vpack.c.b16 %v369, %v368
  %v509 = vpack.c.b16 %v371, %v370
  %v510 = vpack.c.b16 %v373, %v372
  %v511 = vpack.c.b16 %v375, %v374
  %v512 = vpack.c.b16 %v377, %v376
  %v513 = vpack.c.b16 %v379, %v378
  %v514 = vpack.c.b16 %v381, %v380
  %v515 = vpack.c.b16 %v383, %v382
  %v516 = vpack.c.b16 %v385, %v384
  %v517 = vpack.c.b16 %v387, %v386
  %v518 = vpack.c.b16 %v389, %v388
  %v519 = vpack.c.b16 %v391, %v390
  %v520 = vpack.c.b16 %v393, %v392
  %v521 = vpack.c.b16 %v395, %v394
  %v522 = vpack.c.b16 %v397, %v396
  %v523 = vpack.c.b16 %v399, %v398
  %v524 = vpack.c.b16 %v401, %v400
  %v525 = vpack.c.b16 %v403, %v402
  %v526 = vpack.c.b16 %v405, %v404
  %v527 = vpack.c.b16 %v407, %v406
  %v528 = vpack.c.b16 %v409, %v408
  %v529 = vpack.c.b16 %v411, %v410
  %v530 = vpack.c.b16 %v413, %v412
  %v531 = vpack.c.b16 %v415, %v414
  %v532 = vpack.c.b16 %v417, %v416
  %v533 = vpack.c.b16 %v419, %v418
  %v534 = vpack.c.b16 %v421, %v420
  %v535 = vpack.c.b16 %v423, %v422
  %v536 = vpack.c.b16 %v425, %v424
  %v537 = vpack.c.b16 %v427, %v426
  %v538 = vpack.c.b16 %v429, %v428
  %v539 = vpack.c.b16 %v431, %v430
  %v540 = vpack.c.b16 %v433, %v432
  %v541 = vpack.c.b16 %v435, %v434
  %v542 = vpack.c.b16 %v437, %v436
  %v543 = vpack.c.b16 %v439, %v438
  %v544 = vpack.c.b16 %v441, %v440
  %v545 = vpack.c.b16 %v443, %v442
  %v546 = vpack.c.b16 %v445, %v444
  %v547 = vpack.c.b16 %v447, %v446
  %v548 = vpack.c.b16 %v449, %v448
  %v549 = vpack.c.b16 %v451, %v450
  %v550 = vpack.c.b16 %v453, %v452
  %v551 = vpack.c.b16 %v455, %v454
  %v552 = vpack.c.b16 %v457, %v456
  %v553 = vpack.c.b16 %v459, %v458
  %v554 = vpack.c.b16 %v461, %v460
  %v555 = vpack.c.b16 %v463, %v462
  %v556 = vpack.c.b16 %v465, %v464
  %v557 = vpack.c.b16 %v467, %v466
  %v558 = vpack.c.b16 %v469, %v468
  %v559 = vpack.c.b16 %v471, %v470
  %v560 = vpack.c.b16 %v473, %v472
  %v561 = vpack.c.b16 %v475, %v474
  %v562 = vpack.c.b16 %v477, %v476
  %v563 = vpack.c.b16 %v479, %v478
  %v564 = vpack.c.b16 %v481, %v480
  %v565 = vpack.c.b16 %v483, %v482
  %v566 = vpack.c.b16 %v485, %v484
  %v567 = vpack.c.b16 %v487, %v486
  %v568 = vpack.c.b16 %v489, %v488
  %v569 = vpack.c.b16 %v491, %v490
  %v570 = vpack.c.b16 %v493, %v492
  %v571 = vpack.c.b16 %v495, %v494
  %v572 = vpack.c.b16 %v497, %v496
  %v573 = vpack.c.b16 %v499, %v498
  %v574 = vpack.c.b16 %v501, %v500
  %v575 = vpack.c.b16 %v503, %v502
  %648 = vmatpush.bf16.msra.mxu0 %v511
  %649 = vmatpush.bf16.msra.mxu0 %v510
  %650 = vmatpush.bf16.msra.mxu0 %v509
  %651 = vmatpush.bf16.msra.mxu0 %v508
  %652 = vmatpush.bf16.msra.mxu0 %v507
  %653 = vmatpush.bf16.msra.mxu0 %v506
  %654 = vmatpush.bf16.msra.mxu0 %v505
  %655 = vmatpush.bf16.msra.mxu0 %v504
  %656 = vmatmul.bf16.gmra.mxu0 %v198
  %v657 = vpop.f32.mrf.mxu0
  %v658 = vadd.f32 0.0, %v657
  %v659 = vpop.f32.mrf.mxu0
  %v660 = vadd.f32 0.0, %v659
  %661 = vdwg.mxu0
  %662 = vmatpush.bf16.msra.mxu0 %v519
  %663 = vmatpush.bf16.msra.mxu0 %v518
  %664 = vmatpush.bf16.msra.mxu0 %v517
  %665 = vmatpush.bf16.msra.mxu0 %v516
  %666 = vmatpush.bf16.msra.mxu0 %v515
  %667 = vmatpush.bf16.msra.mxu0 %v514
  %668 = vmatpush.bf16.msra.mxu0 %v513
  %669 = vmatpush.bf16.msra.mxu0 %v512
  %670 = vmatmul.bf16.gmra.mxu0 %v199
  %v671 = vpop.f32.mrf.mxu0
  %v672 = vadd.f32 %v658, %v671
  %v673 = vpop.f32.mrf.mxu0
  %v674 = vadd.f32 %v660, %v673
  %675 = vdwg.mxu0
  %676 = vmatpush.bf16.msra.mxu0 %v527
  %677 = vmatpush.bf16.msra.mxu0 %v526
  %678 = vmatpush.bf16.msra.mxu0 %v525
  %679 = vmatpush.bf16.msra.mxu0 %v524
  %680 = vmatpush.bf16.msra.mxu0 %v523
  %681 = vmatpush.bf16.msra.mxu0 %v522
  %682 = vmatpush.bf16.msra.mxu0 %v521
  %683 = vmatpush.bf16.msra.mxu0 %v520
  %684 = vmatmul.bf16.gmra.mxu0 %v200
  %v685 = vpop.f32.mrf.mxu0
  %v686 = vadd.f32 %v672, %v685
  %v687 = vpop.f32.mrf.mxu0
  %v688 = vadd.f32 %v674, %v687
  %689 = vdwg.mxu0
  %690 = vmatpush.bf16.msra.mxu0 %v535
  %691 = vmatpush.bf16.msra.mxu0 %v534
  %692 = vmatpush.bf16.msra.mxu0 %v533
  %693 = vmatpush.bf16.msra.mxu0 %v532
  %694 = vmatpush.bf16.msra.mxu0 %v531
  %695 = vmatpush.bf16.msra.mxu0 %v530
  %696 = vmatpush.bf16.msra.mxu0 %v529
  %697 = vmatpush.bf16.msra.mxu0 %v528
  %698 = vmatmul.bf16.gmra.mxu0 %v201
  %v699 = vpop.f32.mrf.mxu0
  %v700 = vadd.f32 %v686, %v699
  %v701 = vpop.f32.mrf.mxu0
  %v702 = vadd.f32 %v688, %v701
  %703 = vdwg.mxu0
  %704 = vmatpush.bf16.msra.mxu0 %v543
  %705 = vmatpush.bf16.msra.mxu0 %v542
  %706 = vmatpush.bf16.msra.mxu0 %v541
  %707 = vmatpush.bf16.msra.mxu0 %v540
  %708 = vmatpush.bf16.msra.mxu0 %v539
  %709 = vmatpush.bf16.msra.mxu0 %v538
  %710 = vmatpush.bf16.msra.mxu0 %v537
  %711 = vmatpush.bf16.msra.mxu0 %v536
  %712 = vmatmul.bf16.gmra.mxu0 %v202
  %v713 = vpop.f32.mrf.mxu0
  %v714 = vadd.f32 %v700, %v713
  %v715 = vpop.f32.mrf.mxu0
  %v716 = vadd.f32 %v702, %v715
  %717 = vdwg.mxu0
  %718 = vmatpush.bf16.msra.mxu0 %v551
  %719 = vmatpush.bf16.msra.mxu0 %v550
  %720 = vmatpush.bf16.msra.mxu0 %v549
  %721 = vmatpush.bf16.msra.mxu0 %v548
  %722 = vmatpush.bf16.msra.mxu0 %v547
  %723 = vmatpush.bf16.msra.mxu0 %v546
  %724 = vmatpush.bf16.msra.mxu0 %v545
  %725 = vmatpush.bf16.msra.mxu0 %v544
  %726 = vmatmul.bf16.gmra.mxu0 %v203
  %v727 = vpop.f32.mrf.mxu0
  %v728 = vadd.f32 %v714, %v727
  %v729 = vpop.f32.mrf.mxu0
  %v730 = vadd.f32 %v716, %v729
  %731 = vdwg.mxu0
  %732 = vmatpush.bf16.msra.mxu0 %v559
  %733 = vmatpush.bf16.msra.mxu0 %v558
  %734 = vmatpush.bf16.msra.mxu0 %v557
  %735 = vmatpush.bf16.msra.mxu0 %v556
  %736 = vmatpush.bf16.msra.mxu0 %v555
  %737 = vmatpush.bf16.msra.mxu0 %v554
  %738 = vmatpush.bf16.msra.mxu0 %v553
  %739 = vmatpush.bf16.msra.mxu0 %v552
  %740 = vmatmul.bf16.gmra.mxu0 %v204
  %v741 = vpop.f32.mrf.mxu0
  %v742 = vadd.f32 %v728, %v741
  %v743 = vpop.f32.mrf.mxu0
  %v744 = vadd.f32 %v730, %v743
  %745 = vdwg.mxu0
  %746 = vmatpush.bf16.msra.mxu0 %v567
  %747 = vmatpush.bf16.msra.mxu0 %v566
  %748 = vmatpush.bf16.msra.mxu0 %v565
  %749 = vmatpush.bf16.msra.mxu0 %v564
  %750 = vmatpush.bf16.msra.mxu0 %v563
  %751 = vmatpush.bf16.msra.mxu0 %v562
  %752 = vmatpush.bf16.msra.mxu0 %v561
  %753 = vmatpush.bf16.msra.mxu0 %v560
  %754 = vmatmul.bf16.gmra.mxu0 %v205
  %v755 = vpop.f32.mrf.mxu0
  %v756 = vadd.f32 %v742, %v755
  %v757 = vpop.f32.mrf.mxu0
  %v758 = vadd.f32 %v744, %v757
  %759 = vdwg.mxu0
  %760 = vmatpush.bf16.msra.mxu0 %v575
  %761 = vmatpush.bf16.msra.mxu0 %v574
  %762 = vmatpush.bf16.msra.mxu0 %v573
  %763 = vmatpush.bf16.msra.mxu0 %v572
  %764 = vmatpush.bf16.msra.mxu0 %v571
  %765 = vmatpush.bf16.msra.mxu0 %v570
  %766 = vmatpush.bf16.msra.mxu0 %v569
  %767 = vmatpush.bf16.msra.mxu0 %v568
  %768 = vmatmul.bf16.gmra.mxu0 %v206
  %v769 = vpop.f32.mrf.mxu0
  %v770 = vadd.f32 %v756, %v769
  %v771 = vpop.f32.mrf.mxu0
  %v772 = vadd.f32 %v758, %v771
  %773 = vdwg.mxu0
  %v774 = vpack.c.bf16 %v770, %v770
  %v775 = vpack.c.bf16 %v772, %v772
  %vm776 = vcmask 60416
  %777 = vst.msk [vmem:[%s2] sm:$0xf] %vm776, %v774
  %778 = vst.msk [vmem:[%s2 + $0x4] sm:$0xf] %vm776, %v775
  %vm779 = vcmask 64512
  %v780 = vsel %vm779, %v770, 0.0
  %v781 = vsel %vm779, %v772, 0.0
  %v782 = vadd.f32 %v780, %v781
  %v783 = vrot.slane %v782, 4
  %v784 = vadd.f32 %v782, %v783
  %v785 = vrot.slane %v784, 2
  %v786 = vadd.f32 %v784, %v785
  %v787 = vrot.slane %v786, 1
  %v788 = vadd.f32 %v786, %v787
  %v789 = vadd.f32 %v788, 0.0
  %v790 = vmul.f32 %v770, %v770
  %v791 = vmul.f32 %v772, %v772
  %v792 = vsel %vm779, %v790, 0.0
  %v793 = vsel %vm779, %v791, 0.0
  %v794 = vadd.f32 %v792, %v793
  %v795 = vrot.slane %v794, 4
  %v796 = vadd.f32 %v794, %v795
  %v797 = vrot.slane %v796, 2
  %v798 = vadd.f32 %v796, %v797
  %v799 = vrot.slane %v798, 1
  %v800 = vadd.f32 %v798, %v799
  %v801 = vadd.f32 %v800, 0.0
  %vm802 = vcmask 57344
  %803 = vst.msk [vmem:[%s3] sm:$0x1] %vm802, %v789
  %804 = vst.msk [vmem:[%s3 + $0x1] sm:$0x1] %vm802, %v801
  // Predicated region
  $region10: #{spectrogram_encoder.10} parent=0 // pred_check
    _
  $region11: #{spectrogram_encoder.10} parent=0 // pred_check_branch
    %806 = sbr.rel (0) target = $region13
  $region12: #{spectrogram_encoder.10} parent=0 // pred_region
    _
  $region13: #{spectrogram_encoder.10} parent=0 // pred_fallthru
    _
  // Predicated region
  $region14: #{spectrogram_encoder.10} parent=0 // pred_check
    _
  $region15: #{spectrogram_encoder.10} parent=0 // pred_check_branch
    %808 = sbr.rel (0) target = $region17
  $region16: #{spectrogram_encoder.10} parent=0 // pred_region
    _
  $region17: #{spectrogram_encoder.10} parent=0 // pred_fallthru
    _
  // Predicated region
  $region18: #{spectrogram_encoder.10} parent=0 // pred_check
    _
  $region19: #{spectrogram_encoder.10} parent=0 // pred_check_branch
    %810 = sbr.rel (0) target = $region21
  $region20: #{spectrogram_encoder.10} parent=0 // pred_region
    _
  $region21: #{spectrogram_encoder.10} parent=0 // pred_fallthru
    _
  // Predicated region
  $region22: #{spectrogram_encoder.10} parent=0 // pred_check
    _
  $region23: #{spectrogram_encoder.10} parent=0 // pred_check_branch
    %812 = sbr.rel (0) target = $region25
  $region24: #{spectrogram_encoder.10} parent=0 // pred_region
    _
  $region25: #{spectrogram_encoder.10} parent=0 // pred_fallthru
    _

</llo_original>
